<compile_context>
chip_gen: v7x
topology: tpu7x:2x2x1
jax: 0.10.0
libtpu: 0.0.40
codegen_flags: <defaults>
</compile_context>

<pallas_src>
import functools

import jax
import jax.numpy as jnp
import numpy as np
from jax.experimental import pallas as pl
from jax.experimental.pallas import tpu as pltpu


def _round_up(a, b):
    return ((a + b - 1) // b) * b


# ----------------------------- Pallas kernel ------------------------------- #
def _triconv_kernel(col_ref, mi_ref, w1_ref, b1_ref, w2_ref, b2_ref,
                    out_ref, ids_ref):
    """Grid = (node_blocks, edge_blocks); edge axis (last) is the reduction.

    col_ref : (1, TE)   int32   destination node per edge (sentinel N_pad on pads)
    mi_ref  : (TE, D)   bf16    mlp_input tile = [rel_pos(9), x_diff(C_in)]
    w1_ref  : (D, H)    bf16    (H padded to a multiple of 128)
    b1_ref  : (1, H)    f32
    w2_ref  : (H, H)    bf16
    b2_ref  : (1, H)    f32
    out_ref : (TN, H)   f32     resident accumulator for this node block
    ids_ref : (TN, TE)  int32   scratch: node ids of this block (built once/block)
    """
    # program_id reads must stay at the top level of the kernel (NOT inside a
    # pl.when body) so they are substituted correctly during lowering.
    e = pl.program_id(1)
    tn, te = ids_ref.shape
    base = pl.program_id(0) * tn

    @pl.when(e == 0)
    def _():
        out_ref[...] = jnp.zeros_like(out_ref)
        ids_ref[...] = base + jax.lax.broadcasted_iota(jnp.int32, (tn, te), 0)

    # Edge MLP: Linear -> ReLU -> Linear (bf16 operands, f32 MXU accumulation).
    h = jnp.dot(mi_ref[...], w1_ref[...], preferred_element_type=jnp.float32)
    h = jnp.maximum(h + b1_ref[...], 0.0)
    y = jnp.dot(h.astype(jnp.bfloat16), w2_ref[...],
                preferred_element_type=jnp.float32) + b2_ref[...]

    # scatter_add(y, col), restricted to this node block, as a one-hot matmul:
    #   onehot[n, e] = (col[e] == node_id[n])  ->  out += onehot @ y
    onehot = (col_ref[...] == ids_ref[...]).astype(jnp.bfloat16)      # (TN, TE)
    out_ref[...] += jnp.dot(onehot, y.astype(jnp.bfloat16),
                            preferred_element_type=jnp.float32)


def _triconv_pallas_call(col2d, mlp_input, w1, b1, w2, b2, *,
                         n_pad, tile_n, tile_e):
    e_pad, d = mlp_input.shape
    h_pad = w1.shape[1]
    grid_n = n_pad // tile_n
    grid_e = e_pad // tile_e
    grid = (grid_n, grid_e)

    flops = 2 * grid_n * grid_e * tile_e * h_pad * (d + h_pad + tile_n)
    bytes_accessed = (
        grid_n * e_pad * (2 * d + 4)                    # bf16 mlp_input + int32 col
        + 2 * (d * h_pad + h_pad * h_pad) + 8 * h_pad   # bf16 weights + f32 biases
        + n_pad * h_pad * 4                             # f32 output
    )

    return pl.pallas_call(
        _triconv_kernel,
        out_shape=jax.ShapeDtypeStruct((n_pad, h_pad), jnp.float32),
        grid_spec=pltpu.PrefetchScalarGridSpec(
            num_scalar_prefetch=0,
            grid=grid,
            in_specs=[
                pl.BlockSpec((1, tile_e), lambda i, e: (0, e)),     # col indices
                pl.BlockSpec((tile_e, d), lambda i, e: (e, 0)),     # mlp_input tile
                pl.BlockSpec((d, h_pad), lambda i, e: (0, 0)),      # W1 (resident)
                pl.BlockSpec((1, h_pad), lambda i, e: (0, 0)),      # b1
                pl.BlockSpec((h_pad, h_pad), lambda i, e: (0, 0)),  # W2
                pl.BlockSpec((1, h_pad), lambda i, e: (0, 0)),      # b2
            ],
            out_specs=pl.BlockSpec((tile_n, h_pad), lambda i, e: (i, 0)),
            scratch_shapes=[pltpu.VMEM((tile_n, tile_e), jnp.int32)],
        ),
        compiler_params=pltpu.CompilerParams(
            # node-block axis shards across TensorCores; edge axis accumulates.
            dimension_semantics=("parallel", "arbitrary"),
            vmem_limit_bytes=48 * 1024 * 1024,
        ),
        cost_estimate=pl.CostEstimate(
            flops=int(flops), transcendentals=0,
            bytes_accessed=int(bytes_accessed)),
    )(col2d, mlp_input, w1, b1, w2, b2)


# ------------------------------ JAX glue ----------------------------------- #
def _build_mlp_input(x, pos, edge_index):
    """Gathers + relative position encoding: [t_max_diff, t_min_diff, bary_diff, x_diff]."""
    # TODO(synk): per-node scatter_max/min + gathers stay in XLA; a Pallas
    # version would need a sort-by-destination pass which is not worth it here.
    row, col = edge_index[0], edge_index[1]
    n = x.shape[0]

    edge_vec = pos[row] - pos[col]                      # (E, 3)
    abs_ev = jnp.abs(edge_vec)

    # scatter_max / scatter_min of |edge_vec| per destination node.
    t_max = jax.ops.segment_max(abs_ev, col, num_segments=n)
    t_min = jax.ops.segment_min(abs_ev, col, num_segments=n)
    # Explicit "has incoming edge" mask so empty segments get 0 regardless of
    # the segment_max/min fill value (matches torch_scatter zero-fill).
    deg = jax.ops.segment_sum(jnp.ones((col.shape[0],), jnp.float32), col,
                              num_segments=n)
    has_in = (deg > 0.0)[:, None]
    t_max = jnp.where(has_in, t_max, 0.0)
    t_min = jnp.where(has_in, t_min, 0.0)

    barycenter = pos                                    # pos is 2-D -> barycenter = pos
    bary_diff = barycenter[row] - barycenter[col]       # (E, 3)
    t_max_diff = t_max[row] - t_max[col]                # (E, 3)
    t_min_diff = t_min[row] - t_min[col]                # (E, 3)

    rel_pos = jnp.concatenate([t_max_diff, t_min_diff, bary_diff], axis=-1)  # (E, 9)
    x_diff = x[row] - x[col]                            # (E, C_in)
    return jnp.concatenate([rel_pos, x_diff], axis=-1)  # (E, C_in + 9)


@functools.partial(jax.jit, static_argnames=("tile_e",))
def triconv_forward(x, pos, edge_index, params, tile_e=512):
    """Pallas-backed TriConv forward."""
    n = x.shape[0]
    e_total = edge_index.shape[1]
    w1, b1, w2, b2 = params
    d = w1.shape[0]
    h_out = w1.shape[1]

    # Lane-dense channel dim + node/edge padding (all static).
    h_pad = _round_up(h_out, 128)
    tile_n = min(_round_up(n, 8), 256)
    n_pad = _round_up(n, tile_n)
    e_pad = _round_up(e_total, tile_e)

    mlp_input = _build_mlp_input(x, pos, edge_index).astype(jnp.bfloat16)
    mlp_input = jnp.pad(mlp_input, ((0, e_pad - e_total), (0, 0)))   # pad edges with 0

    col = edge_index[1].astype(jnp.int32)
    # Sentinel col = n_pad for padded edges: never matches a node id -> adds zero.
    col2d = jnp.pad(col, (0, e_pad - e_total),
                    constant_values=n_pad).reshape(1, e_pad)

    w1p = jnp.zeros((d, h_pad), jnp.bfloat16).at[:, :h_out].set(w1.astype(jnp.bfloat16))
    b1p = jnp.zeros((1, h_pad), jnp.float32).at[0, :h_out].set(b1.astype(jnp.float32))
    w2p = jnp.zeros((h_pad, h_pad), jnp.bfloat16).at[:h_out, :h_out].set(w2.astype(jnp.bfloat16))
    b2p = jnp.zeros((1, h_pad), jnp.float32).at[0, :h_out].set(b2.astype(jnp.float32))

    out = _triconv_pallas_call(col2d, mlp_input, w1p, b1p, w2p, b2p,
                               n_pad=n_pad, tile_n=tile_n, tile_e=tile_e)
    return out[:n, :h_out]


def triconv_reference(x, pos, edge_index, params):
    """Pure-JAX f32 reference (mirrors the PyTorch forward)."""
    w1, b1, w2, b2 = params
    n = x.shape[0]
    col = edge_index[1]
    mlp_input = _build_mlp_input(x, pos, edge_index)
    h = jnp.maximum(mlp_input @ w1 + b1, 0.0)
    y = h @ w2 + b2
    return jax.ops.segment_sum(y, col, num_segments=n)


def init_params(key, in_channels, out_channels):
    """Deterministic init (PyTorch Linear-style uniform ranges), W stored (in, out)."""
    d = in_channels + 9
    h = out_channels
    k1, k2, k3, k4 = jax.random.split(key, 4)
    lim1 = 1.0 / np.sqrt(d)
    lim2 = 1.0 / np.sqrt(h)
    w1 = jax.random.uniform(k1, (d, h), jnp.float32, -lim1, lim1)
    b1 = jax.random.uniform(k2, (h,), jnp.float32, -lim1, lim1)
    w2 = jax.random.uniform(k3, (h, h), jnp.float32, -lim2, lim2)
    b2 = jax.random.uniform(k4, (h,), jnp.float32, -lim2, lim2)
    return (w1, b1, w2, b2)


# --------------------------------- main ------------------------------------ #
if __name__ == "__main__":
    N = 64            # nodes
    E = 200           # edges (deliberately NOT a multiple of tile_e: exercises padding)
    IN_CHANNELS = 7   # -> mlp_input_dim = 7 + 9 = 16
    OUT_CHANNELS = 32

    key = jax.random.PRNGKey(0)
    kx, kp, kr, kc, kw = jax.random.split(key, 5)

    x = jax.random.normal(kx, (N, IN_CHANNELS), jnp.float32)
    pos = jax.random.normal(kp, (N, 3), jnp.float32)

    row = jax.random.randint(kr, (E,), 0, N, jnp.int32)
    # make sure every node appears as a destination at least once
    col_rand = jax.random.randint(kc, (E - N,), 0, N, jnp.int32)
    col = jnp.concatenate([jnp.arange(N, dtype=jnp.int32), col_rand])
    edge_index = jnp.stack([row, col], axis=0)  # (2, E)

    params = init_params(kw, IN_CHANNELS, OUT_CHANNELS)

    out = jax.block_until_ready(triconv_forward(x, pos, edge_index, params))
    ref = jax.block_until_ready(triconv_reference(x, pos, edge_index, params))

    # bf16 operands (f32 accumulation) -> tolerance looser than pure f32.
    np.testing.assert_allclose(np.asarray(out), np.asarray(ref),
                               rtol=2e-2, atol=5e-2)

    print("KERNEL_OK")
</pallas_src>

<mosaic_0001>
module attributes {stable_mosaic.version = 11 : i64} {
  func.func @_triconv_kernel(%arg0: i32, %arg1: i32, %arg2: memref<1x512xi32, #tpu.memory_space<vmem>>, %arg3: memref<512x16xbf16, #tpu.memory_space<vmem>>, %arg4: memref<16x128xbf16, #tpu.memory_space<vmem>>, %arg5: memref<1x128xf32, #tpu.memory_space<vmem>>, %arg6: memref<128x128xbf16, #tpu.memory_space<vmem>>, %arg7: memref<1x128xf32, #tpu.memory_space<vmem>>, %arg8: memref<64x128xf32, #tpu.memory_space<vmem>>, %arg9: memref<64x512xi32, #tpu.memory_space<vmem>>) attributes {dimension_semantics = [#tpu.dimension_semantics<parallel>, #tpu.dimension_semantics<arbitrary>], iteration_bounds = array<i64: 1, 1>, scalar_prefetch = 0 : i64, scratch_operands = 1 : i64, tpu.core_type = #tpu.core_type<tc>, window_params = [{transform_indices = @transform_0, window_bounds = array<i64: 1, 512>}, {transform_indices = @transform_1, window_bounds = array<i64: 512, 16>}, {pipeline_mode = #tpu.pipeline_mode<synchronous>, transform_indices = @transform_2, window_bounds = array<i64: 16, 128>}, {pipeline_mode = #tpu.pipeline_mode<synchronous>, transform_indices = @transform_3, window_bounds = array<i64: 1, 128>}, {pipeline_mode = #tpu.pipeline_mode<synchronous>, transform_indices = @transform_4, window_bounds = array<i64: 128, 128>}, {pipeline_mode = #tpu.pipeline_mode<synchronous>, transform_indices = @transform_5, window_bounds = array<i64: 1, 128>}, {transform_indices = @transform_6, window_bounds = array<i64: 64, 128>}]} {
    %c64_i32 = arith.constant 64 : i32
    %0 = arith.muli %arg0, %c64_i32 : i32
    %c0_i32 = arith.constant 0 : i32
    %1 = arith.cmpi eq, %arg1, %c0_i32 : i32
    %2 = arith.extui %1 : i1 to i32
    %c0_i32_0 = arith.constant 0 : i32
    %3 = arith.cmpi ne, %2, %c0_i32_0 : i32
    scf.if %3 {
      %cst_21 = arith.constant 0.000000e+00 : f32
      %30 = vector.broadcast %cst_21 : f32 to vector<64x128xf32>
      %c0_22 = arith.constant 0 : index
      %c0_23 = arith.constant 0 : index
      %31 = vector.load %arg8[%c0_22, %c0_23] : memref<64x128xf32, #tpu.memory_space<vmem>>, vector<64x128xf32>
      tpu.vector_store %arg8[%c0_22, %c0_23], %30 {strides = array<i32>} : memref<64x128xf32, #tpu.memory_space<vmem>>, vector<64x128xf32>,
      %32 = tpu.iota {dimensions = array<i32: 0>} : vector<64x512xi32>
      %33 = vector.broadcast %0 : i32 to vector<64x512xi32>
      %34 = arith.addi %33, %32 : vector<64x512xi32>
      %c0_24 = arith.constant 0 : index
      %c0_25 = arith.constant 0 : index
      %35 = vector.load %arg9[%c0_24, %c0_25] : memref<64x512xi32, #tpu.memory_space<vmem>>, vector<64x512xi32>
      tpu.vector_store %arg9[%c0_24, %c0_25], %34 {strides = array<i32>} : memref<64x512xi32, #tpu.memory_space<vmem>>, vector<64x512xi32>,
    } else {
    }
    %c0 = arith.constant 0 : index
    %c0_1 = arith.constant 0 : index
    %4 = vector.load %arg3[%c0, %c0_1] : memref<512x16xbf16, #tpu.memory_space<vmem>>, vector<512x16xbf16>
    %c0_2 = arith.constant 0 : index
    %c0_3 = arith.constant 0 : index
    %5 = vector.load %arg4[%c0_2, %c0_3] : memref<16x128xbf16, #tpu.memory_space<vmem>>, vector<16x128xbf16>
    %cst = arith.constant dense<0.000000e+00> : vector<512x128xf32>
    %6 = tpu.matmul %4, %5, %cst {dimension_numbers = #tpu.dot_dimension_numbers<[1], [0], [0], [1], [0, 0, 1, 1], [], []>} : vector<512x16xbf16>, vector<16x128xbf16>, vector<512x128xf32> -> vector<512x128xf32>
    %c0_4 = arith.constant 0 : index
    %c0_5 = arith.constant 0 : index
    %7 = vector.load %arg5[%c0_4, %c0_5] : memref<1x128xf32, #tpu.memory_space<vmem>>, vector<1x128xf32>
    %8 = vector.broadcast %7 : vector<1x128xf32> to vector<512x128xf32>
    %9 = arith.addf %6, %8 : vector<512x128xf32>
    %cst_6 = arith.constant 0.000000e+00 : f32
    %10 = vector.broadcast %cst_6 : f32 to vector<512x128xf32>
    %11 = arith.maximumf %9, %10 : vector<512x128xf32>
    %12 = arith.truncf %11 : vector<512x128xf32> to vector<512x128xbf16>
    %c0_7 = arith.constant 0 : index
    %c0_8 = arith.constant 0 : index
    %13 = vector.load %arg6[%c0_7, %c0_8] : memref<128x128xbf16, #tpu.memory_space<vmem>>, vector<128x128xbf16>
    %cst_9 = arith.constant dense<0.000000e+00> : vector<512x128xf32>
    %14 = tpu.matmul %12, %13, %cst_9 {dimension_numbers = #tpu.dot_dimension_numbers<[1], [0], [0], [1], [0, 0, 1, 1], [], []>} : vector<512x128xbf16>, vector<128x128xbf16>, vector<512x128xf32> -> vector<512x128xf32>
    %c0_10 = arith.constant 0 : index
    %c0_11 = arith.constant 0 : index
    %15 = vector.load %arg7[%c0_10, %c0_11] : memref<1x128xf32, #tpu.memory_space<vmem>>, vector<1x128xf32>
    %16 = vector.broadcast %15 : vector<1x128xf32> to vector<512x128xf32>
    %17 = arith.addf %14, %16 : vector<512x128xf32>
    %c0_12 = arith.constant 0 : index
    %c0_13 = arith.constant 0 : index
    %18 = vector.load %arg2[%c0_12, %c0_13] : memref<1x512xi32, #tpu.memory_space<vmem>>, vector<1x512xi32>
    %c0_14 = arith.constant 0 : index
    %c0_15 = arith.constant 0 : index
    %19 = vector.load %arg9[%c0_14, %c0_15] : memref<64x512xi32, #tpu.memory_space<vmem>>, vector<64x512xi32>
    %20 = vector.broadcast %18 : vector<1x512xi32> to vector<64x512xi32>
    %21 = arith.cmpi eq, %20, %19 : vector<64x512xi32>
    %22 = arith.extui %21 : vector<64x512xi1> to vector<64x512xi32>
    %23 = arith.sitofp %22 : vector<64x512xi32> to vector<64x512xf32>
    %24 = arith.truncf %23 : vector<64x512xf32> to vector<64x512xbf16>
    %c0_16 = arith.constant 0 : index
    %c0_17 = arith.constant 0 : index
    %25 = vector.load %arg8[%c0_16, %c0_17] : memref<64x128xf32, #tpu.memory_space<vmem>>, vector<64x128xf32>
    %26 = arith.truncf %17 : vector<512x128xf32> to vector<512x128xbf16>
    %cst_18 = arith.constant dense<0.000000e+00> : vector<64x128xf32>
    %27 = tpu.matmul %24, %26, %cst_18 {dimension_numbers = #tpu.dot_dimension_numbers<[1], [0], [0], [1], [0, 0, 1, 1], [], []>} : vector<64x512xbf16>, vector<512x128xbf16>, vector<64x128xf32> -> vector<64x128xf32>
    %28 = arith.addf %25, %27 : vector<64x128xf32>
    %c0_19 = arith.constant 0 : index
    %c0_20 = arith.constant 0 : index
    %29 = vector.load %arg8[%c0_19, %c0_20] : memref<64x128xf32, #tpu.memory_space<vmem>>, vector<64x128xf32>
    tpu.vector_store %arg8[%c0_19, %c0_20], %28 {strides = array<i32>} : memref<64x128xf32, #tpu.memory_space<vmem>>, vector<64x128xf32>,
    return
  }
  func.func @transform_0(%arg0: i32, %arg1: i32) -> (i32, i32) {
    %c0_i32 = arith.constant 0 : i32
    %c0_i32_0 = arith.constant 0 : i32
    return %c0_i32, %arg1 : i32, i32
  }
  func.func @transform_1(%arg0: i32, %arg1: i32) -> (i32, i32) {
    %c0_i32 = arith.constant 0 : i32
    %c0_i32_0 = arith.constant 0 : i32
    return %arg1, %c0_i32 : i32, i32
  }
  func.func @transform_2(%arg0: i32, %arg1: i32) -> (i32, i32) {
    %c0_i32 = arith.constant 0 : i32
    %c0_i32_0 = arith.constant 0 : i32
    %c0_i32_1 = arith.constant 0 : i32
    return %c0_i32, %c0_i32_0 : i32, i32
  }
  func.func @transform_3(%arg0: i32, %arg1: i32) -> (i32, i32) {
    %c0_i32 = arith.constant 0 : i32
    %c0_i32_0 = arith.constant 0 : i32
    %c0_i32_1 = arith.constant 0 : i32
    return %c0_i32, %c0_i32_0 : i32, i32
  }
  func.func @transform_4(%arg0: i32, %arg1: i32) -> (i32, i32) {
    %c0_i32 = arith.constant 0 : i32
    %c0_i32_0 = arith.constant 0 : i32
    %c0_i32_1 = arith.constant 0 : i32
    return %c0_i32, %c0_i32_0 : i32, i32
  }
  func.func @transform_5(%arg0: i32, %arg1: i32) -> (i32, i32) {
    %c0_i32 = arith.constant 0 : i32
    %c0_i32_0 = arith.constant 0 : i32
    %c0_i32_1 = arith.constant 0 : i32
    return %c0_i32, %c0_i32_0 : i32, i32
  }
  func.func @transform_6(%arg0: i32, %arg1: i32) -> (i32, i32) {
    %c0_i32 = arith.constant 0 : i32
    %c0_i32_0 = arith.constant 0 : i32
    return %arg0, %c0_i32 : i32, i32
  }
}

</mosaic_0001>

<llo_original>
// kernel: sub.9
$region0: #{sub.9}
  #allocation0 [shape = 's32[1]{0}', space=sflag, size = 0x4, scoped, tag = 'scoped memory for sub.9']
  %s0 = inlined_call_operand.vmem [shape: f32[200,7], index: 0, kind: input, shape index: {}]
  %s1 = inlined_call_operand.vmem [shape: f32[200,7], index: 1, kind: input, shape index: {}]
  %s2 = inlined_call_operand.vmem [shape: bf16[200,7], index: 2, kind: output, shape index: {}]
  %v3 = vld [vmem:[%s0] sm:$0xff]
  %v4 = vld [vmem:[%s1] sm:$0xff]
  %5 = xla_tuple %v3, %v4
  %6 = xla_tuple %5
  %v7 = vsub.f32 %v3, %v4
  %8 = xla_tuple %v7
  %v9 = vpack.c.bf16 0.0, %v7
  %10 = vst [vmem:[%s2] sm:$0xf] %v9
  %s11 = scalar_lea.vmem %s0, 8
  %v12 = vld [vmem:[%s11] sm:$0xff]
  %s13 = scalar_lea.vmem %s1, 8
  %v14 = vld [vmem:[%s13] sm:$0xff]
  %15 = xla_tuple %v12, %v14
  %16 = xla_tuple %15
  %v17 = vsub.f32 %v12, %v14
  %18 = xla_tuple %v17
  %s19 = scalar_lea.vmem %s2, 4
  %v20 = vpack.c.bf16 0.0, %v17
  %21 = vst [vmem:[%s19] sm:$0xf] %v20
  %s22 = scalar_lea.vmem %s0, 16
  %v23 = vld [vmem:[%s22] sm:$0xff]
  %s24 = scalar_lea.vmem %s1, 16
  %v25 = vld [vmem:[%s24] sm:$0xff]
  %26 = xla_tuple %v23, %v25
  %27 = xla_tuple %26
  %v28 = vsub.f32 %v23, %v25
  %29 = xla_tuple %v28
  %s30 = scalar_lea.vmem %s2, 8
  %v31 = vpack.c.bf16 0.0, %v28
  %32 = vst [vmem:[%s30] sm:$0xf] %v31
  %s33 = scalar_lea.vmem %s0, 24
  %v34 = vld [vmem:[%s33] sm:$0xff]
  %s35 = scalar_lea.vmem %s1, 24
  %v36 = vld [vmem:[%s35] sm:$0xff]
  %37 = xla_tuple %v34, %v36
  %38 = xla_tuple %37
  %v39 = vsub.f32 %v34, %v36
  %40 = xla_tuple %v39
  %s41 = scalar_lea.vmem %s2, 12
  %v42 = vpack.c.bf16 0.0, %v39
  %43 = vst [vmem:[%s41] sm:$0xf] %v42
  %s44 = scalar_lea.vmem %s0, 32
  %v45 = vld [vmem:[%s44] sm:$0xff]
  %s46 = scalar_lea.vmem %s1, 32
  %v47 = vld [vmem:[%s46] sm:$0xff]
  %48 = xla_tuple %v45, %v47
  %49 = xla_tuple %48
  %v50 = vsub.f32 %v45, %v47
  %51 = xla_tuple %v50
  %s52 = scalar_lea.vmem %s2, 16
  %v53 = vpack.c.bf16 0.0, %v50
  %54 = vst [vmem:[%s52] sm:$0xf] %v53
  %s55 = scalar_lea.vmem %s0, 40
  %v56 = vld [vmem:[%s55] sm:$0xff]
  %s57 = scalar_lea.vmem %s1, 40
  %v58 = vld [vmem:[%s57] sm:$0xff]
  %59 = xla_tuple %v56, %v58
  %60 = xla_tuple %59
  %v61 = vsub.f32 %v56, %v58
  %62 = xla_tuple %v61
  %s63 = scalar_lea.vmem %s2, 20
  %v64 = vpack.c.bf16 0.0, %v61
  %65 = vst [vmem:[%s63] sm:$0xf] %v64
  %s66 = scalar_lea.vmem %s0, 48
  %v67 = vld [vmem:[%s66] sm:$0xff]
  %s68 = scalar_lea.vmem %s1, 48
  %v69 = vld [vmem:[%s68] sm:$0xff]
  %70 = xla_tuple %v67, %v69
  %71 = xla_tuple %70
  %v72 = vsub.f32 %v67, %v69
  %73 = xla_tuple %v72
  %s74 = scalar_lea.vmem %s2, 24
  %v75 = vpack.c.bf16 0.0, %v72
  %76 = vst [vmem:[%s74] sm:$0xf] %v75
  %s77 = scalar_lea.vmem %s0, 56
  %v78 = vld [vmem:[%s77] sm:$0xff]
  %s79 = scalar_lea.vmem %s1, 56
  %v80 = vld [vmem:[%s79] sm:$0xff]
  %81 = xla_tuple %v78, %v80
  %82 = xla_tuple %81
  %v83 = vsub.f32 %v78, %v80
  %84 = xla_tuple %v83
  %s85 = scalar_lea.vmem %s2, 28
  %v86 = vpack.c.bf16 0.0, %v83
  %87 = vst [vmem:[%s85] sm:$0xf] %v86
  %s88 = scalar_lea.vmem %s0, 64
  %v89 = vld [vmem:[%s88] sm:$0xff]
  %s90 = scalar_lea.vmem %s1, 64
  %v91 = vld [vmem:[%s90] sm:$0xff]
  %92 = xla_tuple %v89, %v91
  %93 = xla_tuple %92
  %v94 = vsub.f32 %v89, %v91
  %95 = xla_tuple %v94
  %s96 = scalar_lea.vmem %s2, 32
  %v97 = vpack.c.bf16 0.0, %v94
  %98 = vst [vmem:[%s96] sm:$0xf] %v97
  %s99 = scalar_lea.vmem %s0, 72
  %v100 = vld [vmem:[%s99] sm:$0xff]
  %s101 = scalar_lea.vmem %s1, 72
  %v102 = vld [vmem:[%s101] sm:$0xff]
  %103 = xla_tuple %v100, %v102
  %104 = xla_tuple %103
  %v105 = vsub.f32 %v100, %v102
  %106 = xla_tuple %v105
  %s107 = scalar_lea.vmem %s2, 36
  %v108 = vpack.c.bf16 0.0, %v105
  %109 = vst [vmem:[%s107] sm:$0xf] %v108
  %s110 = scalar_lea.vmem %s0, 80
  %v111 = vld [vmem:[%s110] sm:$0xff]
  %s112 = scalar_lea.vmem %s1, 80
  %v113 = vld [vmem:[%s112] sm:$0xff]
  %114 = xla_tuple %v111, %v113
  %115 = xla_tuple %114
  %v116 = vsub.f32 %v111, %v113
  %117 = xla_tuple %v116
  %s118 = scalar_lea.vmem %s2, 40
  %v119 = vpack.c.bf16 0.0, %v116
  %120 = vst [vmem:[%s118] sm:$0xf] %v119
  %s121 = scalar_lea.vmem %s0, 88
  %v122 = vld [vmem:[%s121] sm:$0xff]
  %s123 = scalar_lea.vmem %s1, 88
  %v124 = vld [vmem:[%s123] sm:$0xff]
  %125 = xla_tuple %v122, %v124
  %126 = xla_tuple %125
  %v127 = vsub.f32 %v122, %v124
  %128 = xla_tuple %v127
  %s129 = scalar_lea.vmem %s2, 44
  %v130 = vpack.c.bf16 0.0, %v127
  %131 = vst [vmem:[%s129] sm:$0xf] %v130
  %s132 = scalar_lea.vmem %s0, 96
  %v133 = vld [vmem:[%s132] sm:$0xff]
  %s134 = scalar_lea.vmem %s1, 96
  %v135 = vld [vmem:[%s134] sm:$0xff]
  %136 = xla_tuple %v133, %v135
  %137 = xla_tuple %136
  %v138 = vsub.f32 %v133, %v135
  %139 = xla_tuple %v138
  %s140 = scalar_lea.vmem %s2, 48
  %v141 = vpack.c.bf16 0.0, %v138
  %142 = vst [vmem:[%s140] sm:$0xf] %v141
  %s143 = scalar_lea.vmem %s0, 104
  %v144 = vld [vmem:[%s143] sm:$0xff]
  %s145 = scalar_lea.vmem %s1, 104
  %v146 = vld [vmem:[%s145] sm:$0xff]
  %147 = xla_tuple %v144, %v146
  %148 = xla_tuple %147
  %v149 = vsub.f32 %v144, %v146
  %150 = xla_tuple %v149
  %s151 = scalar_lea.vmem %s2, 52
  %v152 = vpack.c.bf16 0.0, %v149
  %153 = vst [vmem:[%s151] sm:$0xf] %v152
  %s154 = scalar_lea.vmem %s0, 112
  %v155 = vld [vmem:[%s154] sm:$0xff]
  %s156 = scalar_lea.vmem %s1, 112
  %v157 = vld [vmem:[%s156] sm:$0xff]
  %158 = xla_tuple %v155, %v157
  %159 = xla_tuple %158
  %v160 = vsub.f32 %v155, %v157
  %161 = xla_tuple %v160
  %s162 = scalar_lea.vmem %s2, 56
  %v163 = vpack.c.bf16 0.0, %v160
  %164 = vst [vmem:[%s162] sm:$0xf] %v163
  %s165 = scalar_lea.vmem %s0, 120
  %v166 = vld [vmem:[%s165] sm:$0xff]
  %s167 = scalar_lea.vmem %s1, 120
  %v168 = vld [vmem:[%s167] sm:$0xff]
  %169 = xla_tuple %v166, %v168
  %170 = xla_tuple %169
  %v171 = vsub.f32 %v166, %v168
  %172 = xla_tuple %v171
  %s173 = scalar_lea.vmem %s2, 60
  %v174 = vpack.c.bf16 0.0, %v171
  %175 = vst [vmem:[%s173] sm:$0xf] %v174
  %s176 = scalar_lea.vmem %s0, 128
  %v177 = vld [vmem:[%s176] sm:$0xff]
  %s178 = scalar_lea.vmem %s1, 128
  %v179 = vld [vmem:[%s178] sm:$0xff]
  %180 = xla_tuple %v177, %v179
  %181 = xla_tuple %180
  %v182 = vsub.f32 %v177, %v179
  %183 = xla_tuple %v182
  %s184 = scalar_lea.vmem %s2, 64
  %v185 = vpack.c.bf16 0.0, %v182
  %186 = vst [vmem:[%s184] sm:$0xf] %v185
  %s187 = scalar_lea.vmem %s0, 136
  %v188 = vld [vmem:[%s187] sm:$0xff]
  %s189 = scalar_lea.vmem %s1, 136
  %v190 = vld [vmem:[%s189] sm:$0xff]
  %191 = xla_tuple %v188, %v190
  %192 = xla_tuple %191
  %v193 = vsub.f32 %v188, %v190
  %194 = xla_tuple %v193
  %s195 = scalar_lea.vmem %s2, 68
  %v196 = vpack.c.bf16 0.0, %v193
  %197 = vst [vmem:[%s195] sm:$0xf] %v196
  %s198 = scalar_lea.vmem %s0, 144
  %v199 = vld [vmem:[%s198] sm:$0xff]
  %s200 = scalar_lea.vmem %s1, 144
  %v201 = vld [vmem:[%s200] sm:$0xff]
  %202 = xla_tuple %v199, %v201
  %203 = xla_tuple %202
  %v204 = vsub.f32 %v199, %v201
  %205 = xla_tuple %v204
  %s206 = scalar_lea.vmem %s2, 72
  %v207 = vpack.c.bf16 0.0, %v204
  %208 = vst [vmem:[%s206] sm:$0xf] %v207
  %s209 = scalar_lea.vmem %s0, 152
  %v210 = vld [vmem:[%s209] sm:$0xff]
  %s211 = scalar_lea.vmem %s1, 152
  %v212 = vld [vmem:[%s211] sm:$0xff]
  %213 = xla_tuple %v210, %v212
  %214 = xla_tuple %213
  %v215 = vsub.f32 %v210, %v212
  %216 = xla_tuple %v215
  %s217 = scalar_lea.vmem %s2, 76
  %v218 = vpack.c.bf16 0.0, %v215
  %219 = vst [vmem:[%s217] sm:$0xf] %v218
  %s220 = scalar_lea.vmem %s0, 160
  %v221 = vld [vmem:[%s220] sm:$0xff]
  %s222 = scalar_lea.vmem %s1, 160
  %v223 = vld [vmem:[%s222] sm:$0xff]
  %224 = xla_tuple %v221, %v223
  %225 = xla_tuple %224
  %v226 = vsub.f32 %v221, %v223
  %227 = xla_tuple %v226
  %s228 = scalar_lea.vmem %s2, 80
  %v229 = vpack.c.bf16 0.0, %v226
  %230 = vst [vmem:[%s228] sm:$0xf] %v229
  %s231 = scalar_lea.vmem %s0, 168
  %v232 = vld [vmem:[%s231] sm:$0xff]
  %s233 = scalar_lea.vmem %s1, 168
  %v234 = vld [vmem:[%s233] sm:$0xff]
  %235 = xla_tuple %v232, %v234
  %236 = xla_tuple %235
  %v237 = vsub.f32 %v232, %v234
  %238 = xla_tuple %v237
  %s239 = scalar_lea.vmem %s2, 84
  %v240 = vpack.c.bf16 0.0, %v237
  %241 = vst [vmem:[%s239] sm:$0xf] %v240
  %s242 = scalar_lea.vmem %s0, 176
  %v243 = vld [vmem:[%s242] sm:$0xff]
  %s244 = scalar_lea.vmem %s1, 176
  %v245 = vld [vmem:[%s244] sm:$0xff]
  %246 = xla_tuple %v243, %v245
  %247 = xla_tuple %246
  %v248 = vsub.f32 %v243, %v245
  %249 = xla_tuple %v248
  %s250 = scalar_lea.vmem %s2, 88
  %v251 = vpack.c.bf16 0.0, %v248
  %252 = vst [vmem:[%s250] sm:$0xf] %v251
  %s253 = scalar_lea.vmem %s0, 184
  %v254 = vld [vmem:[%s253] sm:$0xff]
  %s255 = scalar_lea.vmem %s1, 184
  %v256 = vld [vmem:[%s255] sm:$0xff]
  %257 = xla_tuple %v254, %v256
  %258 = xla_tuple %257
  %v259 = vsub.f32 %v254, %v256
  %260 = xla_tuple %v259
  %s261 = scalar_lea.vmem %s2, 92
  %v262 = vpack.c.bf16 0.0, %v259
  %263 = vst [vmem:[%s261] sm:$0xf] %v262
  %s264 = scalar_lea.vmem %s0, 192
  %v265 = vld [vmem:[%s264] sm:$0xff]
  %s266 = scalar_lea.vmem %s1, 192
  %v267 = vld [vmem:[%s266] sm:$0xff]
  %268 = xla_tuple %v265, %v267
  %269 = xla_tuple %268
  %v270 = vsub.f32 %v265, %v267
  %271 = xla_tuple %v270
  %s272 = scalar_lea.vmem %s2, 96
  %v273 = vpack.c.bf16 0.0, %v270
  %274 = vst [vmem:[%s272] sm:$0xf] %v273

// kernel: sub.5
$region0: #{sub.5}
  #allocation0 [shape = 's32[1]{0}', space=sflag, size = 0x4, scoped, tag = 'scoped memory for sub.5']
  %s0 = inlined_call_operand.vmem [shape: f32[200,3], index: 0, kind: input, shape index: {}]
  %s1 = inlined_call_operand.vmem [shape: f32[200,3], index: 1, kind: input, shape index: {}]
  %s2 = inlined_call_operand.vmem [shape: f32[200,3], index: 2, kind: output, shape index: {}]
  %v3 = vld [vmem:[%s0] sm:$0xff]
  %v4 = vld [vmem:[%s1] sm:$0xff]
  %5 = xla_tuple %v3, %v4
  %6 = xla_tuple %5
  %v7 = vsub.f32 %v3, %v4
  %8 = xla_tuple %v7
  %9 = vst [vmem:[%s2] sm:$0xff] %v7
  %s10 = scalar_lea.vmem %s0, 8
  %v11 = vld [vmem:[%s10] sm:$0xff]
  %s12 = scalar_lea.vmem %s1, 8
  %v13 = vld [vmem:[%s12] sm:$0xff]
  %14 = xla_tuple %v11, %v13
  %15 = xla_tuple %14
  %v16 = vsub.f32 %v11, %v13
  %17 = xla_tuple %v16
  %s18 = scalar_lea.vmem %s2, 8
  %19 = vst [vmem:[%s18] sm:$0xff] %v16
  %s20 = scalar_lea.vmem %s0, 16
  %v21 = vld [vmem:[%s20] sm:$0xff]
  %s22 = scalar_lea.vmem %s1, 16
  %v23 = vld [vmem:[%s22] sm:$0xff]
  %24 = xla_tuple %v21, %v23
  %25 = xla_tuple %24
  %v26 = vsub.f32 %v21, %v23
  %27 = xla_tuple %v26
  %s28 = scalar_lea.vmem %s2, 16
  %29 = vst [vmem:[%s28] sm:$0xff] %v26
  %s30 = scalar_lea.vmem %s0, 24
  %v31 = vld [vmem:[%s30] sm:$0xff]
  %s32 = scalar_lea.vmem %s1, 24
  %v33 = vld [vmem:[%s32] sm:$0xff]
  %34 = xla_tuple %v31, %v33
  %35 = xla_tuple %34
  %v36 = vsub.f32 %v31, %v33
  %37 = xla_tuple %v36
  %s38 = scalar_lea.vmem %s2, 24
  %39 = vst [vmem:[%s38] sm:$0xff] %v36
  %s40 = scalar_lea.vmem %s0, 32
  %v41 = vld [vmem:[%s40] sm:$0xff]
  %s42 = scalar_lea.vmem %s1, 32
  %v43 = vld [vmem:[%s42] sm:$0xff]
  %44 = xla_tuple %v41, %v43
  %45 = xla_tuple %44
  %v46 = vsub.f32 %v41, %v43
  %47 = xla_tuple %v46
  %s48 = scalar_lea.vmem %s2, 32
  %49 = vst [vmem:[%s48] sm:$0xff] %v46
  %s50 = scalar_lea.vmem %s0, 40
  %v51 = vld [vmem:[%s50] sm:$0xff]
  %s52 = scalar_lea.vmem %s1, 40
  %v53 = vld [vmem:[%s52] sm:$0xff]
  %54 = xla_tuple %v51, %v53
  %55 = xla_tuple %54
  %v56 = vsub.f32 %v51, %v53
  %57 = xla_tuple %v56
  %s58 = scalar_lea.vmem %s2, 40
  %59 = vst [vmem:[%s58] sm:$0xff] %v56
  %s60 = scalar_lea.vmem %s0, 48
  %v61 = vld [vmem:[%s60] sm:$0xff]
  %s62 = scalar_lea.vmem %s1, 48
  %v63 = vld [vmem:[%s62] sm:$0xff]
  %64 = xla_tuple %v61, %v63
  %65 = xla_tuple %64
  %v66 = vsub.f32 %v61, %v63
  %67 = xla_tuple %v66
  %s68 = scalar_lea.vmem %s2, 48
  %69 = vst [vmem:[%s68] sm:$0xff] %v66
  %s70 = scalar_lea.vmem %s0, 56
  %v71 = vld [vmem:[%s70] sm:$0xff]
  %s72 = scalar_lea.vmem %s1, 56
  %v73 = vld [vmem:[%s72] sm:$0xff]
  %74 = xla_tuple %v71, %v73
  %75 = xla_tuple %74
  %v76 = vsub.f32 %v71, %v73
  %77 = xla_tuple %v76
  %s78 = scalar_lea.vmem %s2, 56
  %79 = vst [vmem:[%s78] sm:$0xff] %v76
  %s80 = scalar_lea.vmem %s0, 64
  %v81 = vld [vmem:[%s80] sm:$0xff]
  %s82 = scalar_lea.vmem %s1, 64
  %v83 = vld [vmem:[%s82] sm:$0xff]
  %84 = xla_tuple %v81, %v83
  %85 = xla_tuple %84
  %v86 = vsub.f32 %v81, %v83
  %87 = xla_tuple %v86
  %s88 = scalar_lea.vmem %s2, 64
  %89 = vst [vmem:[%s88] sm:$0xff] %v86
  %s90 = scalar_lea.vmem %s0, 72
  %v91 = vld [vmem:[%s90] sm:$0xff]
  %s92 = scalar_lea.vmem %s1, 72
  %v93 = vld [vmem:[%s92] sm:$0xff]
  %94 = xla_tuple %v91, %v93
  %95 = xla_tuple %94
  %v96 = vsub.f32 %v91, %v93
  %97 = xla_tuple %v96
  %s98 = scalar_lea.vmem %s2, 72
  %99 = vst [vmem:[%s98] sm:$0xff] %v96
  %s100 = scalar_lea.vmem %s0, 80
  %v101 = vld [vmem:[%s100] sm:$0xff]
  %s102 = scalar_lea.vmem %s1, 80
  %v103 = vld [vmem:[%s102] sm:$0xff]
  %104 = xla_tuple %v101, %v103
  %105 = xla_tuple %104
  %v106 = vsub.f32 %v101, %v103
  %107 = xla_tuple %v106
  %s108 = scalar_lea.vmem %s2, 80
  %109 = vst [vmem:[%s108] sm:$0xff] %v106
  %s110 = scalar_lea.vmem %s0, 88
  %v111 = vld [vmem:[%s110] sm:$0xff]
  %s112 = scalar_lea.vmem %s1, 88
  %v113 = vld [vmem:[%s112] sm:$0xff]
  %114 = xla_tuple %v111, %v113
  %115 = xla_tuple %114
  %v116 = vsub.f32 %v111, %v113
  %117 = xla_tuple %v116
  %s118 = scalar_lea.vmem %s2, 88
  %119 = vst [vmem:[%s118] sm:$0xff] %v116
  %s120 = scalar_lea.vmem %s0, 96
  %v121 = vld [vmem:[%s120] sm:$0xff]
  %s122 = scalar_lea.vmem %s1, 96
  %v123 = vld [vmem:[%s122] sm:$0xff]
  %124 = xla_tuple %v121, %v123
  %125 = xla_tuple %124
  %v126 = vsub.f32 %v121, %v123
  %127 = xla_tuple %v126
  %s128 = scalar_lea.vmem %s2, 96
  %129 = vst [vmem:[%s128] sm:$0xff] %v126
  %s130 = scalar_lea.vmem %s0, 104
  %v131 = vld [vmem:[%s130] sm:$0xff]
  %s132 = scalar_lea.vmem %s1, 104
  %v133 = vld [vmem:[%s132] sm:$0xff]
  %134 = xla_tuple %v131, %v133
  %135 = xla_tuple %134
  %v136 = vsub.f32 %v131, %v133
  %137 = xla_tuple %v136
  %s138 = scalar_lea.vmem %s2, 104
  %139 = vst [vmem:[%s138] sm:$0xff] %v136
  %s140 = scalar_lea.vmem %s0, 112
  %v141 = vld [vmem:[%s140] sm:$0xff]
  %s142 = scalar_lea.vmem %s1, 112
  %v143 = vld [vmem:[%s142] sm:$0xff]
  %144 = xla_tuple %v141, %v143
  %145 = xla_tuple %144
  %v146 = vsub.f32 %v141, %v143
  %147 = xla_tuple %v146
  %s148 = scalar_lea.vmem %s2, 112
  %149 = vst [vmem:[%s148] sm:$0xff] %v146
  %s150 = scalar_lea.vmem %s0, 120
  %v151 = vld [vmem:[%s150] sm:$0xff]
  %s152 = scalar_lea.vmem %s1, 120
  %v153 = vld [vmem:[%s152] sm:$0xff]
  %154 = xla_tuple %v151, %v153
  %155 = xla_tuple %154
  %v156 = vsub.f32 %v151, %v153
  %157 = xla_tuple %v156
  %s158 = scalar_lea.vmem %s2, 120
  %159 = vst [vmem:[%s158] sm:$0xff] %v156
  %s160 = scalar_lea.vmem %s0, 128
  %v161 = vld [vmem:[%s160] sm:$0xff]
  %s162 = scalar_lea.vmem %s1, 128
  %v163 = vld [vmem:[%s162] sm:$0xff]
  %164 = xla_tuple %v161, %v163
  %165 = xla_tuple %164
  %v166 = vsub.f32 %v161, %v163
  %167 = xla_tuple %v166
  %s168 = scalar_lea.vmem %s2, 128
  %169 = vst [vmem:[%s168] sm:$0xff] %v166
  %s170 = scalar_lea.vmem %s0, 136
  %v171 = vld [vmem:[%s170] sm:$0xff]
  %s172 = scalar_lea.vmem %s1, 136
  %v173 = vld [vmem:[%s172] sm:$0xff]
  %174 = xla_tuple %v171, %v173
  %175 = xla_tuple %174
  %v176 = vsub.f32 %v171, %v173
  %177 = xla_tuple %v176
  %s178 = scalar_lea.vmem %s2, 136
  %179 = vst [vmem:[%s178] sm:$0xff] %v176
  %s180 = scalar_lea.vmem %s0, 144
  %v181 = vld [vmem:[%s180] sm:$0xff]
  %s182 = scalar_lea.vmem %s1, 144
  %v183 = vld [vmem:[%s182] sm:$0xff]
  %184 = xla_tuple %v181, %v183
  %185 = xla_tuple %184
  %v186 = vsub.f32 %v181, %v183
  %187 = xla_tuple %v186
  %s188 = scalar_lea.vmem %s2, 144
  %189 = vst [vmem:[%s188] sm:$0xff] %v186
  %s190 = scalar_lea.vmem %s0, 152
  %v191 = vld [vmem:[%s190] sm:$0xff]
  %s192 = scalar_lea.vmem %s1, 152
  %v193 = vld [vmem:[%s192] sm:$0xff]
  %194 = xla_tuple %v191, %v193
  %195 = xla_tuple %194
  %v196 = vsub.f32 %v191, %v193
  %197 = xla_tuple %v196
  %s198 = scalar_lea.vmem %s2, 152
  %199 = vst [vmem:[%s198] sm:$0xff] %v196
  %s200 = scalar_lea.vmem %s0, 160
  %v201 = vld [vmem:[%s200] sm:$0xff]
  %s202 = scalar_lea.vmem %s1, 160
  %v203 = vld [vmem:[%s202] sm:$0xff]
  %204 = xla_tuple %v201, %v203
  %205 = xla_tuple %204
  %v206 = vsub.f32 %v201, %v203
  %207 = xla_tuple %v206
  %s208 = scalar_lea.vmem %s2, 160
  %209 = vst [vmem:[%s208] sm:$0xff] %v206
  %s210 = scalar_lea.vmem %s0, 168
  %v211 = vld [vmem:[%s210] sm:$0xff]
  %s212 = scalar_lea.vmem %s1, 168
  %v213 = vld [vmem:[%s212] sm:$0xff]
  %214 = xla_tuple %v211, %v213
  %215 = xla_tuple %214
  %v216 = vsub.f32 %v211, %v213
  %217 = xla_tuple %v216
  %s218 = scalar_lea.vmem %s2, 168
  %219 = vst [vmem:[%s218] sm:$0xff] %v216
  %s220 = scalar_lea.vmem %s0, 176
  %v221 = vld [vmem:[%s220] sm:$0xff]
  %s222 = scalar_lea.vmem %s1, 176
  %v223 = vld [vmem:[%s222] sm:$0xff]
  %224 = xla_tuple %v221, %v223
  %225 = xla_tuple %224
  %v226 = vsub.f32 %v221, %v223
  %227 = xla_tuple %v226
  %s228 = scalar_lea.vmem %s2, 176
  %229 = vst [vmem:[%s228] sm:$0xff] %v226
  %s230 = scalar_lea.vmem %s0, 184
  %v231 = vld [vmem:[%s230] sm:$0xff]
  %s232 = scalar_lea.vmem %s1, 184
  %v233 = vld [vmem:[%s232] sm:$0xff]
  %234 = xla_tuple %v231, %v233
  %235 = xla_tuple %234
  %v236 = vsub.f32 %v231, %v233
  %237 = xla_tuple %v236
  %s238 = scalar_lea.vmem %s2, 184
  %239 = vst [vmem:[%s238] sm:$0xff] %v236
  %s240 = scalar_lea.vmem %s0, 192
  %v241 = vld [vmem:[%s240] sm:$0xff]
  %s242 = scalar_lea.vmem %s1, 192
  %v243 = vld [vmem:[%s242] sm:$0xff]
  %244 = xla_tuple %v241, %v243
  %245 = xla_tuple %244
  %v246 = vsub.f32 %v241, %v243
  %247 = xla_tuple %v246
  %s248 = scalar_lea.vmem %s2, 192
  %249 = vst [vmem:[%s248] sm:$0xff] %v246

// kernel: sub.8
$region0: #{sub.8}
  #allocation0 [shape = 's32[1]{0}', space=sflag, size = 0x4, scoped, tag = 'scoped memory for sub.8']
  %s0 = inlined_call_operand.vmem [shape: f32[200,3], index: 0, kind: input, shape index: {}]
  %s1 = inlined_call_operand.vmem [shape: f32[200,3], index: 1, kind: input, shape index: {}]
  %s2 = inlined_call_operand.vmem [shape: bf16[200,3], index: 2, kind: output, shape index: {}]
  %v3 = vld [vmem:[%s0] sm:$0xff]
  %v4 = vld [vmem:[%s1] sm:$0xff]
  %5 = xla_tuple %v3, %v4
  %6 = xla_tuple %5
  %v7 = vsub.f32 %v3, %v4
  %8 = xla_tuple %v7
  %v9 = vpack.c.bf16 0.0, %v7
  %10 = vst [vmem:[%s2] sm:$0xf] %v9
  %s11 = scalar_lea.vmem %s0, 8
  %v12 = vld [vmem:[%s11] sm:$0xff]
  %s13 = scalar_lea.vmem %s1, 8
  %v14 = vld [vmem:[%s13] sm:$0xff]
  %15 = xla_tuple %v12, %v14
  %16 = xla_tuple %15
  %v17 = vsub.f32 %v12, %v14
  %18 = xla_tuple %v17
  %s19 = scalar_lea.vmem %s2, 4
  %v20 = vpack.c.bf16 0.0, %v17
  %21 = vst [vmem:[%s19] sm:$0xf] %v20
  %s22 = scalar_lea.vmem %s0, 16
  %v23 = vld [vmem:[%s22] sm:$0xff]
  %s24 = scalar_lea.vmem %s1, 16
  %v25 = vld [vmem:[%s24] sm:$0xff]
  %26 = xla_tuple %v23, %v25
  %27 = xla_tuple %26
  %v28 = vsub.f32 %v23, %v25
  %29 = xla_tuple %v28
  %s30 = scalar_lea.vmem %s2, 8
  %v31 = vpack.c.bf16 0.0, %v28
  %32 = vst [vmem:[%s30] sm:$0xf] %v31
  %s33 = scalar_lea.vmem %s0, 24
  %v34 = vld [vmem:[%s33] sm:$0xff]
  %s35 = scalar_lea.vmem %s1, 24
  %v36 = vld [vmem:[%s35] sm:$0xff]
  %37 = xla_tuple %v34, %v36
  %38 = xla_tuple %37
  %v39 = vsub.f32 %v34, %v36
  %40 = xla_tuple %v39
  %s41 = scalar_lea.vmem %s2, 12
  %v42 = vpack.c.bf16 0.0, %v39
  %43 = vst [vmem:[%s41] sm:$0xf] %v42
  %s44 = scalar_lea.vmem %s0, 32
  %v45 = vld [vmem:[%s44] sm:$0xff]
  %s46 = scalar_lea.vmem %s1, 32
  %v47 = vld [vmem:[%s46] sm:$0xff]
  %48 = xla_tuple %v45, %v47
  %49 = xla_tuple %48
  %v50 = vsub.f32 %v45, %v47
  %51 = xla_tuple %v50
  %s52 = scalar_lea.vmem %s2, 16
  %v53 = vpack.c.bf16 0.0, %v50
  %54 = vst [vmem:[%s52] sm:$0xf] %v53
  %s55 = scalar_lea.vmem %s0, 40
  %v56 = vld [vmem:[%s55] sm:$0xff]
  %s57 = scalar_lea.vmem %s1, 40
  %v58 = vld [vmem:[%s57] sm:$0xff]
  %59 = xla_tuple %v56, %v58
  %60 = xla_tuple %59
  %v61 = vsub.f32 %v56, %v58
  %62 = xla_tuple %v61
  %s63 = scalar_lea.vmem %s2, 20
  %v64 = vpack.c.bf16 0.0, %v61
  %65 = vst [vmem:[%s63] sm:$0xf] %v64
  %s66 = scalar_lea.vmem %s0, 48
  %v67 = vld [vmem:[%s66] sm:$0xff]
  %s68 = scalar_lea.vmem %s1, 48
  %v69 = vld [vmem:[%s68] sm:$0xff]
  %70 = xla_tuple %v67, %v69
  %71 = xla_tuple %70
  %v72 = vsub.f32 %v67, %v69
  %73 = xla_tuple %v72
  %s74 = scalar_lea.vmem %s2, 24
  %v75 = vpack.c.bf16 0.0, %v72
  %76 = vst [vmem:[%s74] sm:$0xf] %v75
  %s77 = scalar_lea.vmem %s0, 56
  %v78 = vld [vmem:[%s77] sm:$0xff]
  %s79 = scalar_lea.vmem %s1, 56
  %v80 = vld [vmem:[%s79] sm:$0xff]
  %81 = xla_tuple %v78, %v80
  %82 = xla_tuple %81
  %v83 = vsub.f32 %v78, %v80
  %84 = xla_tuple %v83
  %s85 = scalar_lea.vmem %s2, 28
  %v86 = vpack.c.bf16 0.0, %v83
  %87 = vst [vmem:[%s85] sm:$0xf] %v86
  %s88 = scalar_lea.vmem %s0, 64
  %v89 = vld [vmem:[%s88] sm:$0xff]
  %s90 = scalar_lea.vmem %s1, 64
  %v91 = vld [vmem:[%s90] sm:$0xff]
  %92 = xla_tuple %v89, %v91
  %93 = xla_tuple %92
  %v94 = vsub.f32 %v89, %v91
  %95 = xla_tuple %v94
  %s96 = scalar_lea.vmem %s2, 32
  %v97 = vpack.c.bf16 0.0, %v94
  %98 = vst [vmem:[%s96] sm:$0xf] %v97
  %s99 = scalar_lea.vmem %s0, 72
  %v100 = vld [vmem:[%s99] sm:$0xff]
  %s101 = scalar_lea.vmem %s1, 72
  %v102 = vld [vmem:[%s101] sm:$0xff]
  %103 = xla_tuple %v100, %v102
  %104 = xla_tuple %103
  %v105 = vsub.f32 %v100, %v102
  %106 = xla_tuple %v105
  %s107 = scalar_lea.vmem %s2, 36
  %v108 = vpack.c.bf16 0.0, %v105
  %109 = vst [vmem:[%s107] sm:$0xf] %v108
  %s110 = scalar_lea.vmem %s0, 80
  %v111 = vld [vmem:[%s110] sm:$0xff]
  %s112 = scalar_lea.vmem %s1, 80
  %v113 = vld [vmem:[%s112] sm:$0xff]
  %114 = xla_tuple %v111, %v113
  %115 = xla_tuple %114
  %v116 = vsub.f32 %v111, %v113
  %117 = xla_tuple %v116
  %s118 = scalar_lea.vmem %s2, 40
  %v119 = vpack.c.bf16 0.0, %v116
  %120 = vst [vmem:[%s118] sm:$0xf] %v119
  %s121 = scalar_lea.vmem %s0, 88
  %v122 = vld [vmem:[%s121] sm:$0xff]
  %s123 = scalar_lea.vmem %s1, 88
  %v124 = vld [vmem:[%s123] sm:$0xff]
  %125 = xla_tuple %v122, %v124
  %126 = xla_tuple %125
  %v127 = vsub.f32 %v122, %v124
  %128 = xla_tuple %v127
  %s129 = scalar_lea.vmem %s2, 44
  %v130 = vpack.c.bf16 0.0, %v127
  %131 = vst [vmem:[%s129] sm:$0xf] %v130
  %s132 = scalar_lea.vmem %s0, 96
  %v133 = vld [vmem:[%s132] sm:$0xff]
  %s134 = scalar_lea.vmem %s1, 96
  %v135 = vld [vmem:[%s134] sm:$0xff]
  %136 = xla_tuple %v133, %v135
  %137 = xla_tuple %136
  %v138 = vsub.f32 %v133, %v135
  %139 = xla_tuple %v138
  %s140 = scalar_lea.vmem %s2, 48
  %v141 = vpack.c.bf16 0.0, %v138
  %142 = vst [vmem:[%s140] sm:$0xf] %v141
  %s143 = scalar_lea.vmem %s0, 104
  %v144 = vld [vmem:[%s143] sm:$0xff]
  %s145 = scalar_lea.vmem %s1, 104
  %v146 = vld [vmem:[%s145] sm:$0xff]
  %147 = xla_tuple %v144, %v146
  %148 = xla_tuple %147
  %v149 = vsub.f32 %v144, %v146
  %150 = xla_tuple %v149
  %s151 = scalar_lea.vmem %s2, 52
  %v152 = vpack.c.bf16 0.0, %v149
  %153 = vst [vmem:[%s151] sm:$0xf] %v152
  %s154 = scalar_lea.vmem %s0, 112
  %v155 = vld [vmem:[%s154] sm:$0xff]
  %s156 = scalar_lea.vmem %s1, 112
  %v157 = vld [vmem:[%s156] sm:$0xff]
  %158 = xla_tuple %v155, %v157
  %159 = xla_tuple %158
  %v160 = vsub.f32 %v155, %v157
  %161 = xla_tuple %v160
  %s162 = scalar_lea.vmem %s2, 56
  %v163 = vpack.c.bf16 0.0, %v160
  %164 = vst [vmem:[%s162] sm:$0xf] %v163
  %s165 = scalar_lea.vmem %s0, 120
  %v166 = vld [vmem:[%s165] sm:$0xff]
  %s167 = scalar_lea.vmem %s1, 120
  %v168 = vld [vmem:[%s167] sm:$0xff]
  %169 = xla_tuple %v166, %v168
  %170 = xla_tuple %169
  %v171 = vsub.f32 %v166, %v168
  %172 = xla_tuple %v171
  %s173 = scalar_lea.vmem %s2, 60
  %v174 = vpack.c.bf16 0.0, %v171
  %175 = vst [vmem:[%s173] sm:$0xf] %v174
  %s176 = scalar_lea.vmem %s0, 128
  %v177 = vld [vmem:[%s176] sm:$0xff]
  %s178 = scalar_lea.vmem %s1, 128
  %v179 = vld [vmem:[%s178] sm:$0xff]
  %180 = xla_tuple %v177, %v179
  %181 = xla_tuple %180
  %v182 = vsub.f32 %v177, %v179
  %183 = xla_tuple %v182
  %s184 = scalar_lea.vmem %s2, 64
  %v185 = vpack.c.bf16 0.0, %v182
  %186 = vst [vmem:[%s184] sm:$0xf] %v185
  %s187 = scalar_lea.vmem %s0, 136
  %v188 = vld [vmem:[%s187] sm:$0xff]
  %s189 = scalar_lea.vmem %s1, 136
  %v190 = vld [vmem:[%s189] sm:$0xff]
  %191 = xla_tuple %v188, %v190
  %192 = xla_tuple %191
  %v193 = vsub.f32 %v188, %v190
  %194 = xla_tuple %v193
  %s195 = scalar_lea.vmem %s2, 68
  %v196 = vpack.c.bf16 0.0, %v193
  %197 = vst [vmem:[%s195] sm:$0xf] %v196
  %s198 = scalar_lea.vmem %s0, 144
  %v199 = vld [vmem:[%s198] sm:$0xff]
  %s200 = scalar_lea.vmem %s1, 144
  %v201 = vld [vmem:[%s200] sm:$0xff]
  %202 = xla_tuple %v199, %v201
  %203 = xla_tuple %202
  %v204 = vsub.f32 %v199, %v201
  %205 = xla_tuple %v204
  %s206 = scalar_lea.vmem %s2, 72
  %v207 = vpack.c.bf16 0.0, %v204
  %208 = vst [vmem:[%s206] sm:$0xf] %v207
  %s209 = scalar_lea.vmem %s0, 152
  %v210 = vld [vmem:[%s209] sm:$0xff]
  %s211 = scalar_lea.vmem %s1, 152
  %v212 = vld [vmem:[%s211] sm:$0xff]
  %213 = xla_tuple %v210, %v212
  %214 = xla_tuple %213
  %v215 = vsub.f32 %v210, %v212
  %216 = xla_tuple %v215
  %s217 = scalar_lea.vmem %s2, 76
  %v218 = vpack.c.bf16 0.0, %v215
  %219 = vst [vmem:[%s217] sm:$0xf] %v218
  %s220 = scalar_lea.vmem %s0, 160
  %v221 = vld [vmem:[%s220] sm:$0xff]
  %s222 = scalar_lea.vmem %s1, 160
  %v223 = vld [vmem:[%s222] sm:$0xff]
  %224 = xla_tuple %v221, %v223
  %225 = xla_tuple %224
  %v226 = vsub.f32 %v221, %v223
  %227 = xla_tuple %v226
  %s228 = scalar_lea.vmem %s2, 80
  %v229 = vpack.c.bf16 0.0, %v226
  %230 = vst [vmem:[%s228] sm:$0xf] %v229
  %s231 = scalar_lea.vmem %s0, 168
  %v232 = vld [vmem:[%s231] sm:$0xff]
  %s233 = scalar_lea.vmem %s1, 168
  %v234 = vld [vmem:[%s233] sm:$0xff]
  %235 = xla_tuple %v232, %v234
  %236 = xla_tuple %235
  %v237 = vsub.f32 %v232, %v234
  %238 = xla_tuple %v237
  %s239 = scalar_lea.vmem %s2, 84
  %v240 = vpack.c.bf16 0.0, %v237
  %241 = vst [vmem:[%s239] sm:$0xf] %v240
  %s242 = scalar_lea.vmem %s0, 176
  %v243 = vld [vmem:[%s242] sm:$0xff]
  %s244 = scalar_lea.vmem %s1, 176
  %v245 = vld [vmem:[%s244] sm:$0xff]
  %246 = xla_tuple %v243, %v245
  %247 = xla_tuple %246
  %v248 = vsub.f32 %v243, %v245
  %249 = xla_tuple %v248
  %s250 = scalar_lea.vmem %s2, 88
  %v251 = vpack.c.bf16 0.0, %v248
  %252 = vst [vmem:[%s250] sm:$0xf] %v251
  %s253 = scalar_lea.vmem %s0, 184
  %v254 = vld [vmem:[%s253] sm:$0xff]
  %s255 = scalar_lea.vmem %s1, 184
  %v256 = vld [vmem:[%s255] sm:$0xff]
  %257 = xla_tuple %v254, %v256
  %258 = xla_tuple %257
  %v259 = vsub.f32 %v254, %v256
  %260 = xla_tuple %v259
  %s261 = scalar_lea.vmem %s2, 92
  %v262 = vpack.c.bf16 0.0, %v259
  %263 = vst [vmem:[%s261] sm:$0xf] %v262
  %s264 = scalar_lea.vmem %s0, 192
  %v265 = vld [vmem:[%s264] sm:$0xff]
  %s266 = scalar_lea.vmem %s1, 192
  %v267 = vld [vmem:[%s266] sm:$0xff]
  %268 = xla_tuple %v265, %v267
  %269 = xla_tuple %268
  %v270 = vsub.f32 %v265, %v267
  %271 = xla_tuple %v270
  %s272 = scalar_lea.vmem %s2, 96
  %v273 = vpack.c.bf16 0.0, %v270
  %274 = vst [vmem:[%s272] sm:$0xf] %v273

// kernel: triconv_forward.1
$region0: #{triconv_forward.1}
  #allocation0 [shape = 'u32[]', space=smem, size = 0x4, offset = 0x4, fixed_abs, tag = 'smem constant byte address 0x4 - core index']
  #allocation1 [shape = 'u32[144,128]{1,0:T(1,128)}', space=vmem, size = 0x12000, scoped, tag = 'internal scratch']
  #allocation2 [shape = 's32[64,512]{1,0:T(8,128)}', space=vmem, size = 0x20000, scoped, tag = 'scratch operand']
  %s0 = inlined_call_operand.vmem [shape: s32[1,512], index: 0, kind: input, shape index: {}]
  %s1 = inlined_call_operand.vmem [shape: bf16[512,16], index: 1, kind: input, shape index: {}]
  %s2 = inlined_call_operand.vmem [shape: bf16[16,128], index: 2, kind: input, shape index: {}]
  %s3 = inlined_call_operand.vmem [shape: f32[1,128], index: 3, kind: input, shape index: {}]
  %s4 = inlined_call_operand.vmem [shape: bf16[128,128], index: 4, kind: input, shape index: {}]
  %s5 = inlined_call_operand.vmem [shape: f32[1,128], index: 5, kind: input, shape index: {}]
  %s6 = inlined_call_operand.vmem [shape: f32[64,128], index: 6, kind: output, shape index: {}]
  %s7 = sld [smem:[#allocation0]]
  $region38: #{triconv_forward.1} parent=0
    _
  %s9 = ssub.s32 1, %s7
  %s10 = scalar_select 0, %s9, %s7
  // Predicated region
  $region2: #{triconv_forward.1} parent=0 // pred_check
    _
  $region3: #{triconv_forward.1} parent=0 // pred_check_branch
    %12 = sbr.rel (0) target = $region5
  $region4: #{triconv_forward.1} parent=0 // pred_region
    _
  $region5: #{triconv_forward.1} parent=0 // pred_fallthru
    _
  // Predicated region
  $region6: #{triconv_forward.1} parent=0 // pred_check
    _
  $region7: #{triconv_forward.1} parent=0 // pred_check_branch
    %14 = sbr.rel (0) target = $region9
  $region8: #{triconv_forward.1} parent=0 // pred_region
    _
  $region9: #{triconv_forward.1} parent=0 // pred_fallthru
    _
  // Predicated region
  $region10: #{triconv_forward.1} parent=0 // pred_check
    _
  $region11: #{triconv_forward.1} parent=0 // pred_check_branch
    %16 = sbr.rel (0) target = $region13
  $region12: #{triconv_forward.1} parent=0 // pred_region
    _
  $region13: #{triconv_forward.1} parent=0 // pred_fallthru
    _
  // Predicated region
  $region14: #{triconv_forward.1} parent=0 // pred_check
    _
  $region15: #{triconv_forward.1} parent=0 // pred_check_branch
    %18 = sbr.rel (0) target = $region17
  $region16: #{triconv_forward.1} parent=0 // pred_region
    _
  $region17: #{triconv_forward.1} parent=0 // pred_fallthru
    _
  // Predicated region
  $region18: #{triconv_forward.1} parent=0 // pred_check
    _
  $region19: #{triconv_forward.1} parent=0 // pred_check_branch
    %20 = sbr.rel (0) target = $region21
  $region20: #{triconv_forward.1} parent=0 // pred_region
    _
  $region21: #{triconv_forward.1} parent=0 // pred_fallthru
    _
  // Predicated region
  $region22: #{triconv_forward.1} parent=0 // pred_check
    _
  $region23: #{triconv_forward.1} parent=0 // pred_check_branch
    %22 = sbr.rel (0) target = $region25
  $region24: #{triconv_forward.1} parent=0 // pred_region
    _
  $region25: #{triconv_forward.1} parent=0 // pred_fallthru
    _
  %s24 = smul.u32 0, 64
  %p25 = scmp.eq.s32.totalorder 0, 0
  // Predicated region
  $region26: #{triconv_forward.1} parent=0 // pred_check
    %p26 = pneg %p25
  $region27: #{triconv_forward.1} parent=0 // pred_check_branch
    %28 = sbr.rel (%p26) target = $region29
  $region28: #{triconv_forward.1} parent=0 // pred_region
    %29 = vst [vmem:[%s6] sm:$0xff] 0.0
    %30 = vst [vmem:[%s6 + $0x8] sm:$0xff] 0.0
    %31 = vst [vmem:[%s6 + $0x10] sm:$0xff] 0.0
    %32 = vst [vmem:[%s6 + $0x18] sm:$0xff] 0.0
    %33 = vst [vmem:[%s6 + $0x20] sm:$0xff] 0.0
    %34 = vst [vmem:[%s6 + $0x28] sm:$0xff] 0.0
    %35 = vst [vmem:[%s6 + $0x30] sm:$0xff] 0.0
    %36 = vst [vmem:[%s6 + $0x38] sm:$0xff] 0.0
    %v37 = vlaneseq
    %v38 = vshrl.u32 %v37, 7
    %v39 = vadd.s32 %v38, 8
    %v40 = vadd.s32 %v38, 16
    %v41 = vadd.s32 %v38, 24
    %v42 = vadd.s32 %v38, 32
    %v43 = vadd.s32 %v38, 40
    %v44 = vadd.s32 %v38, 48
    %v45 = vadd.s32 %v38, 56
    %v46 = vstv %s24
    %v47 = vadd.s32 %v46, %v38
    %v48 = vadd.s32 %v46, %v39
    %v49 = vadd.s32 %v46, %v40
    %v50 = vadd.s32 %v46, %v41
    %v51 = vadd.s32 %v46, %v42
    %v52 = vadd.s32 %v46, %v43
    %v53 = vadd.s32 %v46, %v44
    %v54 = vadd.s32 %v46, %v45
    %55 = vst [vmem:[#allocation2] sm:$0xff] %v47
    %56 = vst [vmem:[#allocation2 + $0x8] sm:$0xff] %v47
    %57 = vst [vmem:[#allocation2 + $0x10] sm:$0xff] %v47
    %58 = vst [vmem:[#allocation2 + $0x18] sm:$0xff] %v47
    %59 = vst [vmem:[#allocation2 + $0x20] sm:$0xff] %v48
    %60 = vst [vmem:[#allocation2 + $0x28] sm:$0xff] %v48
    %61 = vst [vmem:[#allocation2 + $0x30] sm:$0xff] %v48
    %62 = vst [vmem:[#allocation2 + $0x38] sm:$0xff] %v48
    %63 = vst [vmem:[#allocation2 + $0x40] sm:$0xff] %v49
    %64 = vst [vmem:[#allocation2 + $0x48] sm:$0xff] %v49
    %65 = vst [vmem:[#allocation2 + $0x50] sm:$0xff] %v49
    %66 = vst [vmem:[#allocation2 + $0x58] sm:$0xff] %v49
    %67 = vst [vmem:[#allocation2 + $0x60] sm:$0xff] %v50
    %68 = vst [vmem:[#allocation2 + $0x68] sm:$0xff] %v50
    %69 = vst [vmem:[#allocation2 + $0x70] sm:$0xff] %v50
    %70 = vst [vmem:[#allocation2 + $0x78] sm:$0xff] %v50
    %71 = vst [vmem:[#allocation2 + $0x80] sm:$0xff] %v51
    %72 = vst [vmem:[#allocation2 + $0x88] sm:$0xff] %v51
    %73 = vst [vmem:[#allocation2 + $0x90] sm:$0xff] %v51
    %74 = vst [vmem:[#allocation2 + $0x98] sm:$0xff] %v51
    %75 = vst [vmem:[#allocation2 + $0xa0] sm:$0xff] %v52
    %76 = vst [vmem:[#allocation2 + $0xa8] sm:$0xff] %v52
    %77 = vst [vmem:[#allocation2 + $0xb0] sm:$0xff] %v52
    %78 = vst [vmem:[#allocation2 + $0xb8] sm:$0xff] %v52
    %79 = vst [vmem:[#allocation2 + $0xc0] sm:$0xff] %v53
    %80 = vst [vmem:[#allocation2 + $0xc8] sm:$0xff] %v53
    %81 = vst [vmem:[#allocation2 + $0xd0] sm:$0xff] %v53
    %82 = vst [vmem:[#allocation2 + $0xd8] sm:$0xff] %v53
    %83 = vst [vmem:[#allocation2 + $0xe0] sm:$0xff] %v54
    %84 = vst [vmem:[#allocation2 + $0xe8] sm:$0xff] %v54
    %85 = vst [vmem:[#allocation2 + $0xf0] sm:$0xff] %v54
    %86 = vst [vmem:[#allocation2 + $0xf8] sm:$0xff] %v54
  $region29: #{triconv_forward.1} parent=0 // pred_fallthru
    _
  %v87 = vld [vmem:[%s1] sm:$0xf]
  %v88 = vld [vmem:[%s1 + $0x4] sm:$0xf]
  %v89 = vld [vmem:[%s1 + $0x8] sm:$0xf]
  %v90 = vld [vmem:[%s1 + $0xc] sm:$0xf]
  %v91 = vld [vmem:[%s1 + $0x10] sm:$0xf]
  %v92 = vld [vmem:[%s1 + $0x14] sm:$0xf]
  %v93 = vld [vmem:[%s1 + $0x18] sm:$0xf]
  %v94 = vld [vmem:[%s1 + $0x1c] sm:$0xf]
  %v95 = vld [vmem:[%s1 + $0x20] sm:$0xf]
  %v96 = vld [vmem:[%s1 + $0x24] sm:$0xf]
  %v97 = vld [vmem:[%s1 + $0x28] sm:$0xf]
  %v98 = vld [vmem:[%s1 + $0x2c] sm:$0xf]
  %v99 = vld [vmem:[%s1 + $0x30] sm:$0xf]
  %v100 = vld [vmem:[%s1 + $0x34] sm:$0xf]
  %v101 = vld [vmem:[%s1 + $0x38] sm:$0xf]
  %v102 = vld [vmem:[%s1 + $0x3c] sm:$0xf]
  %v103 = vld [vmem:[%s1 + $0x40] sm:$0xf]
  %v104 = vld [vmem:[%s1 + $0x44] sm:$0xf]
  %v105 = vld [vmem:[%s1 + $0x48] sm:$0xf]
  %v106 = vld [vmem:[%s1 + $0x4c] sm:$0xf]
  %v107 = vld [vmem:[%s1 + $0x50] sm:$0xf]
  %v108 = vld [vmem:[%s1 + $0x54] sm:$0xf]
  %v109 = vld [vmem:[%s1 + $0x58] sm:$0xf]
  %v110 = vld [vmem:[%s1 + $0x5c] sm:$0xf]
  %v111 = vld [vmem:[%s1 + $0x60] sm:$0xf]
  %v112 = vld [vmem:[%s1 + $0x64] sm:$0xf]
  %v113 = vld [vmem:[%s1 + $0x68] sm:$0xf]
  %v114 = vld [vmem:[%s1 + $0x6c] sm:$0xf]
  %v115 = vld [vmem:[%s1 + $0x70] sm:$0xf]
  %v116 = vld [vmem:[%s1 + $0x74] sm:$0xf]
  %v117 = vld [vmem:[%s1 + $0x78] sm:$0xf]
  %v118 = vld [vmem:[%s1 + $0x7c] sm:$0xf]
  %v119 = vld [vmem:[%s1 + $0x80] sm:$0xf]
  %v120 = vld [vmem:[%s1 + $0x84] sm:$0xf]
  %v121 = vld [vmem:[%s1 + $0x88] sm:$0xf]
  %v122 = vld [vmem:[%s1 + $0x8c] sm:$0xf]
  %v123 = vld [vmem:[%s1 + $0x90] sm:$0xf]
  %v124 = vld [vmem:[%s1 + $0x94] sm:$0xf]
  %v125 = vld [vmem:[%s1 + $0x98] sm:$0xf]
  %v126 = vld [vmem:[%s1 + $0x9c] sm:$0xf]
  %v127 = vld [vmem:[%s1 + $0xa0] sm:$0xf]
  %v128 = vld [vmem:[%s1 + $0xa4] sm:$0xf]
  %v129 = vld [vmem:[%s1 + $0xa8] sm:$0xf]
  %v130 = vld [vmem:[%s1 + $0xac] sm:$0xf]
  %v131 = vld [vmem:[%s1 + $0xb0] sm:$0xf]
  %v132 = vld [vmem:[%s1 + $0xb4] sm:$0xf]
  %v133 = vld [vmem:[%s1 + $0xb8] sm:$0xf]
  %v134 = vld [vmem:[%s1 + $0xbc] sm:$0xf]
  %v135 = vld [vmem:[%s1 + $0xc0] sm:$0xf]
  %v136 = vld [vmem:[%s1 + $0xc4] sm:$0xf]
  %v137 = vld [vmem:[%s1 + $0xc8] sm:$0xf]
  %v138 = vld [vmem:[%s1 + $0xcc] sm:$0xf]
  %v139 = vld [vmem:[%s1 + $0xd0] sm:$0xf]
  %v140 = vld [vmem:[%s1 + $0xd4] sm:$0xf]
  %v141 = vld [vmem:[%s1 + $0xd8] sm:$0xf]
  %v142 = vld [vmem:[%s1 + $0xdc] sm:$0xf]
  %v143 = vld [vmem:[%s1 + $0xe0] sm:$0xf]
  %v144 = vld [vmem:[%s1 + $0xe4] sm:$0xf]
  %v145 = vld [vmem:[%s1 + $0xe8] sm:$0xf]
  %v146 = vld [vmem:[%s1 + $0xec] sm:$0xf]
  %v147 = vld [vmem:[%s1 + $0xf0] sm:$0xf]
  %v148 = vld [vmem:[%s1 + $0xf4] sm:$0xf]
  %v149 = vld [vmem:[%s1 + $0xf8] sm:$0xf]
  %v150 = vld [vmem:[%s1 + $0xfc] sm:$0xf]
  %v151 = vld [vmem:[%s2] sm:$0xf]
  %v152 = vld [vmem:[%s2 + $0x4] sm:$0xf]
  %v153 = vld [vmem:[%s3] sm:$0x1]
  %v155 = vlaneseq
  %v156 = vshrl.u32 %v155, 7
  %v157 = vsub.s32 0, %v156
  %v158 = vrot.slane %v153, %v157
  %v224 = vunpack.c.l.b16 %v87
  %v225 = vunpack.c.l.b16 %v88
  %v226 = vunpack.c.l.b16 %v89
  %v227 = vunpack.c.l.b16 %v90
  %v228 = vunpack.c.l.b16 %v91
  %v229 = vunpack.c.l.b16 %v92
  %v230 = vunpack.c.l.b16 %v93
  %v231 = vunpack.c.l.b16 %v94
  %v232 = vunpack.c.l.b16 %v95
  %v233 = vunpack.c.l.b16 %v96
  %v234 = vunpack.c.l.b16 %v97
  %v235 = vunpack.c.l.b16 %v98
  %v236 = vunpack.c.l.b16 %v99
  %v237 = vunpack.c.l.b16 %v100
  %v238 = vunpack.c.l.b16 %v101
  %v239 = vunpack.c.l.b16 %v102
  %v240 = vunpack.c.l.b16 %v103
  %v241 = vunpack.c.l.b16 %v104
  %v242 = vunpack.c.l.b16 %v105
  %v243 = vunpack.c.l.b16 %v106
  %v244 = vunpack.c.l.b16 %v107
  %v245 = vunpack.c.l.b16 %v108
  %v246 = vunpack.c.l.b16 %v109
  %v247 = vunpack.c.l.b16 %v110
  %v248 = vunpack.c.l.b16 %v111
  %v249 = vunpack.c.l.b16 %v112
  %v250 = vunpack.c.l.b16 %v113
  %v251 = vunpack.c.l.b16 %v114
  %v252 = vunpack.c.l.b16 %v115
  %v253 = vunpack.c.l.b16 %v116
  %v254 = vunpack.c.l.b16 %v117
  %v255 = vunpack.c.l.b16 %v118
  %v256 = vunpack.c.l.b16 %v119
  %v257 = vunpack.c.l.b16 %v120
  %v258 = vunpack.c.l.b16 %v121
  %v259 = vunpack.c.l.b16 %v122
  %v260 = vunpack.c.l.b16 %v123
  %v261 = vunpack.c.l.b16 %v124
  %v262 = vunpack.c.l.b16 %v125
  %v263 = vunpack.c.l.b16 %v126
  %v264 = vunpack.c.l.b16 %v127
  %v265 = vunpack.c.l.b16 %v128
  %v266 = vunpack.c.l.b16 %v129
  %v267 = vunpack.c.l.b16 %v130
  %v268 = vunpack.c.l.b16 %v131
  %v269 = vunpack.c.l.b16 %v132
  %v270 = vunpack.c.l.b16 %v133
  %v271 = vunpack.c.l.b16 %v134
  %v272 = vunpack.c.l.b16 %v135
  %v273 = vunpack.c.l.b16 %v136
  %v274 = vunpack.c.l.b16 %v137
  %v275 = vunpack.c.l.b16 %v138
  %v276 = vunpack.c.l.b16 %v139
  %v277 = vunpack.c.l.b16 %v140
  %v278 = vunpack.c.l.b16 %v141
  %v279 = vunpack.c.l.b16 %v142
  %v280 = vunpack.c.l.b16 %v143
  %v281 = vunpack.c.l.b16 %v144
  %v282 = vunpack.c.l.b16 %v145
  %v283 = vunpack.c.l.b16 %v146
  %v284 = vunpack.c.l.b16 %v147
  %v285 = vunpack.c.l.b16 %v148
  %v286 = vunpack.c.l.b16 %v149
  %v287 = vunpack.c.l.b16 %v150
  %v288 = vpack.c.b16 %v225, %v224
  %v289 = vpack.c.b16 %v227, %v226
  %v290 = vpack.c.b16 %v229, %v228
  %v291 = vpack.c.b16 %v231, %v230
  %v292 = vpack.c.b16 %v233, %v232
  %v293 = vpack.c.b16 %v235, %v234
  %v294 = vpack.c.b16 %v237, %v236
  %v295 = vpack.c.b16 %v239, %v238
  %v296 = vpack.c.b16 %v241, %v240
  %v297 = vpack.c.b16 %v243, %v242
  %v298 = vpack.c.b16 %v245, %v244
  %v299 = vpack.c.b16 %v247, %v246
  %v300 = vpack.c.b16 %v249, %v248
  %v301 = vpack.c.b16 %v251, %v250
  %v302 = vpack.c.b16 %v253, %v252
  %v303 = vpack.c.b16 %v255, %v254
  %v304 = vpack.c.b16 %v257, %v256
  %v305 = vpack.c.b16 %v259, %v258
  %v306 = vpack.c.b16 %v261, %v260
  %v307 = vpack.c.b16 %v263, %v262
  %v308 = vpack.c.b16 %v265, %v264
  %v309 = vpack.c.b16 %v267, %v266
  %v310 = vpack.c.b16 %v269, %v268
  %v311 = vpack.c.b16 %v271, %v270
  %v312 = vpack.c.b16 %v273, %v272
  %v313 = vpack.c.b16 %v275, %v274
  %v314 = vpack.c.b16 %v277, %v276
  %v315 = vpack.c.b16 %v279, %v278
  %v316 = vpack.c.b16 %v281, %v280
  %v317 = vpack.c.b16 %v283, %v282
  %v318 = vpack.c.b16 %v285, %v284
  %v319 = vpack.c.b16 %v287, %v286
  %v322 = vunpack.c.l.b16 %v151
  %v323 = vunpack.c.l.b16 %v152
  %v324 = vpack.c.b16 %v323, %v322
  %vm326 = vcmask 130048
  %v328 = vsel %vm326, %v288, 0
  %v331 = vsel %vm326, %v289, 0
  %v334 = vsel %vm326, %v290, 0
  %v337 = vsel %vm326, %v291, 0
  %v340 = vsel %vm326, %v292, 0
  %v343 = vsel %vm326, %v293, 0
  %v346 = vsel %vm326, %v294, 0
  %v349 = vsel %vm326, %v295, 0
  %v352 = vsel %vm326, %v296, 0
  %v355 = vsel %vm326, %v297, 0
  %v358 = vsel %vm326, %v298, 0
  %v361 = vsel %vm326, %v299, 0
  %v364 = vsel %vm326, %v300, 0
  %v367 = vsel %vm326, %v301, 0
  %v370 = vsel %vm326, %v302, 0
  %v373 = vsel %vm326, %v303, 0
  %v376 = vsel %vm326, %v304, 0
  %v379 = vsel %vm326, %v305, 0
  %v382 = vsel %vm326, %v306, 0
  %v385 = vsel %vm326, %v307, 0
  %v388 = vsel %vm326, %v308, 0
  %v391 = vsel %vm326, %v309, 0
  %v394 = vsel %vm326, %v310, 0
  %v397 = vsel %vm326, %v311, 0
  %v400 = vsel %vm326, %v312, 0
  %v403 = vsel %vm326, %v313, 0
  %v406 = vsel %vm326, %v314, 0
  %v409 = vsel %vm326, %v315, 0
  %v412 = vsel %vm326, %v316, 0
  %v415 = vsel %vm326, %v317, 0
  %v418 = vsel %vm326, %v318, 0
  %v421 = vsel %vm326, %v319, 0
  %423 = vmatprep.subr.bf16.mxu0 0
  %424 = vmatpush1.bf16.msra.mxu0 %v324
  %425 = vmatprep.subr.bf16.mxu0 0
  %426 = vmatpush1.bf16.msra.mxu0 0
  %427 = vmatprep.subr.bf16.mxu0 0
  %428 = vmatpush1.bf16.msra.mxu0 0
  %429 = vmatprep.subr.bf16.mxu0 0
  %430 = vmatpush1.bf16.msra.mxu0 0
  %431 = vmatprep.subr.bf16.mxu0 0
  %432 = vmatpush1.bf16.msra.mxu0 0
  %433 = vmatprep.subr.bf16.mxu0 0
  %434 = vmatpush1.bf16.msra.mxu0 0
  %435 = vmatprep.subr.bf16.mxu0 0
  %436 = vmatpush1.bf16.msra.mxu0 0
  %437 = vmatprep.subr.bf16.mxu0 0
  %438 = vmatpush1.bf16.msra.mxu0 0
  %439 = vmatprep.subr.bf16.mxu0 0
  %440 = vmatpush1.bf16.msra.mxu0 0
  %441 = vmatprep.subr.bf16.mxu0 0
  %442 = vmatpush1.bf16.msra.mxu0 0
  %443 = vmatprep.subr.bf16.mxu0 0
  %444 = vmatpush1.bf16.msra.mxu0 0
  %445 = vmatprep.subr.bf16.mxu0 0
  %446 = vmatpush1.bf16.msra.mxu0 0
  %447 = vmatprep.subr.bf16.mxu0 0
  %448 = vmatpush1.bf16.msra.mxu0 0
  %449 = vmatprep.subr.bf16.mxu0 0
  %450 = vmatpush1.bf16.msra.mxu0 0
  %451 = vmatprep.subr.bf16.mxu0 0
  %452 = vmatpush1.bf16.msra.mxu0 0
  %453 = vmatprep.subr.bf16.mxu0 0
  %454 = vmatpush1.bf16.msra.mxu0 0
  %455 = vmatprep.mubr.bf16.mxu0 0
  %456 = vmatmul.mubr.bf16.gmra.mrb[0].mxu0 %v328
  %v457 = vpop.f32.mrb[0].mxu0
  %v458 = vadd.f32 %v158, %v457
  %v459 = vpop.f32.mrb[0].mxu0
  %v460 = vpop.f32.mrb[0].mxu0
  %v461 = vadd.f32 %v158, %v460
  %v462 = vpop.f32.mrb[0].mxu0
  %463 = vmatprep.mubr.bf16.mxu0 0
  %464 = vmatmul.mubr.bf16.gmra.mrb[0].mxu0 %v331
  %v465 = vpop.f32.mrb[0].mxu0
  %v466 = vadd.f32 %v158, %v465
  %v467 = vpop.f32.mrb[0].mxu0
  %v468 = vpop.f32.mrb[0].mxu0
  %v469 = vadd.f32 %v158, %v468
  %v470 = vpop.f32.mrb[0].mxu0
  %471 = vmatprep.mubr.bf16.mxu0 0
  %472 = vmatmul.mubr.bf16.gmra.mrb[0].mxu0 %v334
  %v473 = vpop.f32.mrb[0].mxu0
  %v474 = vadd.f32 %v158, %v473
  %v475 = vpop.f32.mrb[0].mxu0
  %v476 = vpop.f32.mrb[0].mxu0
  %v477 = vadd.f32 %v158, %v476
  %v478 = vpop.f32.mrb[0].mxu0
  %479 = vmatprep.mubr.bf16.mxu0 0
  %480 = vmatmul.mubr.bf16.gmra.mrb[0].mxu0 %v337
  %v481 = vpop.f32.mrb[0].mxu0
  %v482 = vadd.f32 %v158, %v481
  %v483 = vpop.f32.mrb[0].mxu0
  %v484 = vpop.f32.mrb[0].mxu0
  %v485 = vadd.f32 %v158, %v484
  %v486 = vpop.f32.mrb[0].mxu0
  %487 = vmatprep.mubr.bf16.mxu0 0
  %488 = vmatmul.mubr.bf16.gmra.mrb[0].mxu0 %v340
  %v489 = vpop.f32.mrb[0].mxu0
  %v490 = vadd.f32 %v158, %v489
  %v491 = vpop.f32.mrb[0].mxu0
  %v492 = vpop.f32.mrb[0].mxu0
  %v493 = vadd.f32 %v158, %v492
  %v494 = vpop.f32.mrb[0].mxu0
  %495 = vmatprep.mubr.bf16.mxu0 0
  %496 = vmatmul.mubr.bf16.gmra.mrb[0].mxu0 %v343
  %v497 = vpop.f32.mrb[0].mxu0
  %v498 = vadd.f32 %v158, %v497
  %v499 = vpop.f32.mrb[0].mxu0
  %v500 = vpop.f32.mrb[0].mxu0
  %v501 = vadd.f32 %v158, %v500
  %v502 = vpop.f32.mrb[0].mxu0
  %503 = vmatprep.mubr.bf16.mxu0 0
  %504 = vmatmul.mubr.bf16.gmra.mrb[0].mxu0 %v346
  %v505 = vpop.f32.mrb[0].mxu0
  %v506 = vadd.f32 %v158, %v505
  %v507 = vpop.f32.mrb[0].mxu0
  %v508 = vpop.f32.mrb[0].mxu0
  %v509 = vadd.f32 %v158, %v508
  %v510 = vpop.f32.mrb[0].mxu0
  %511 = vmatprep.mubr.bf16.mxu0 0
  %512 = vmatmul.mubr.bf16.gmra.mrb[0].mxu0 %v349
  %v513 = vpop.f32.mrb[0].mxu0
  %v514 = vadd.f32 %v158, %v513
  %v515 = vpop.f32.mrb[0].mxu0
  %v516 = vpop.f32.mrb[0].mxu0
  %v517 = vadd.f32 %v158, %v516
  %v518 = vpop.f32.mrb[0].mxu0
  %519 = vmatprep.mubr.bf16.mxu0 0
  %520 = vmatmul.mubr.bf16.gmra.mrb[0].mxu0 %v352
  %v521 = vpop.f32.mrb[0].mxu0
  %v522 = vadd.f32 %v158, %v521
  %v523 = vpop.f32.mrb[0].mxu0
  %v524 = vpop.f32.mrb[0].mxu0
  %v525 = vadd.f32 %v158, %v524
  %v526 = vpop.f32.mrb[0].mxu0
  %527 = vmatprep.mubr.bf16.mxu0 0
  %528 = vmatmul.mubr.bf16.gmra.mrb[0].mxu0 %v355
  %v529 = vpop.f32.mrb[0].mxu0
  %v530 = vadd.f32 %v158, %v529
  %v531 = vpop.f32.mrb[0].mxu0
  %v532 = vpop.f32.mrb[0].mxu0
  %v533 = vadd.f32 %v158, %v532
  %v534 = vpop.f32.mrb[0].mxu0
  %535 = vmatprep.mubr.bf16.mxu0 0
  %536 = vmatmul.mubr.bf16.gmra.mrb[0].mxu0 %v358
  %v537 = vpop.f32.mrb[0].mxu0
  %v538 = vadd.f32 %v158, %v537
  %v539 = vpop.f32.mrb[0].mxu0
  %v540 = vpop.f32.mrb[0].mxu0
  %v541 = vadd.f32 %v158, %v540
  %v542 = vpop.f32.mrb[0].mxu0
  %543 = vmatprep.mubr.bf16.mxu0 0
  %544 = vmatmul.mubr.bf16.gmra.mrb[0].mxu0 %v361
  %v545 = vpop.f32.mrb[0].mxu0
  %v546 = vadd.f32 %v158, %v545
  %v547 = vpop.f32.mrb[0].mxu0
  %v548 = vpop.f32.mrb[0].mxu0
  %v549 = vadd.f32 %v158, %v548
  %v550 = vpop.f32.mrb[0].mxu0
  %551 = vmatprep.mubr.bf16.mxu0 0
  %552 = vmatmul.mubr.bf16.gmra.mrb[0].mxu0 %v364
  %v553 = vpop.f32.mrb[0].mxu0
  %v554 = vadd.f32 %v158, %v553
  %v555 = vpop.f32.mrb[0].mxu0
  %v556 = vpop.f32.mrb[0].mxu0
  %v557 = vadd.f32 %v158, %v556
  %v558 = vpop.f32.mrb[0].mxu0
  %559 = vmatprep.mubr.bf16.mxu0 0
  %560 = vmatmul.mubr.bf16.gmra.mrb[0].mxu0 %v367
  %v561 = vpop.f32.mrb[0].mxu0
  %v562 = vadd.f32 %v158, %v561
  %v563 = vpop.f32.mrb[0].mxu0
  %v564 = vpop.f32.mrb[0].mxu0
  %v565 = vadd.f32 %v158, %v564
  %v566 = vpop.f32.mrb[0].mxu0
  %567 = vmatprep.mubr.bf16.mxu0 0
  %568 = vmatmul.mubr.bf16.gmra.mrb[0].mxu0 %v370
  %v569 = vpop.f32.mrb[0].mxu0
  %v570 = vadd.f32 %v158, %v569
  %v571 = vpop.f32.mrb[0].mxu0
  %v572 = vpop.f32.mrb[0].mxu0
  %v573 = vadd.f32 %v158, %v572
  %v574 = vpop.f32.mrb[0].mxu0
  %575 = vmatprep.mubr.bf16.mxu0 0
  %576 = vmatmul.mubr.bf16.gmra.mrb[0].mxu0 %v373
  %v577 = vpop.f32.mrb[0].mxu0
  %v578 = vadd.f32 %v158, %v577
  %v579 = vpop.f32.mrb[0].mxu0
  %v580 = vpop.f32.mrb[0].mxu0
  %v581 = vadd.f32 %v158, %v580
  %v582 = vpop.f32.mrb[0].mxu0
  %583 = vmatprep.mubr.bf16.mxu0 0
  %584 = vmatmul.mubr.bf16.gmra.mrb[0].mxu0 %v376
  %v585 = vpop.f32.mrb[0].mxu0
  %v586 = vadd.f32 %v158, %v585
  %v587 = vpop.f32.mrb[0].mxu0
  %v588 = vpop.f32.mrb[0].mxu0
  %v589 = vadd.f32 %v158, %v588
  %v590 = vpop.f32.mrb[0].mxu0
  %591 = vmatprep.mubr.bf16.mxu0 0
  %592 = vmatmul.mubr.bf16.gmra.mrb[0].mxu0 %v379
  %v593 = vpop.f32.mrb[0].mxu0
  %v594 = vadd.f32 %v158, %v593
  %v595 = vpop.f32.mrb[0].mxu0
  %v596 = vpop.f32.mrb[0].mxu0
  %v597 = vadd.f32 %v158, %v596
  %v598 = vpop.f32.mrb[0].mxu0
  %599 = vmatprep.mubr.bf16.mxu0 0
  %600 = vmatmul.mubr.bf16.gmra.mrb[0].mxu0 %v382
  %v601 = vpop.f32.mrb[0].mxu0
  %v602 = vadd.f32 %v158, %v601
  %v603 = vpop.f32.mrb[0].mxu0
  %v604 = vpop.f32.mrb[0].mxu0
  %v605 = vadd.f32 %v158, %v604
  %v606 = vpop.f32.mrb[0].mxu0
  %607 = vmatprep.mubr.bf16.mxu0 0
  %608 = vmatmul.mubr.bf16.gmra.mrb[0].mxu0 %v385
  %v609 = vpop.f32.mrb[0].mxu0
  %v610 = vadd.f32 %v158, %v609
  %v611 = vpop.f32.mrb[0].mxu0
  %v612 = vpop.f32.mrb[0].mxu0
  %v613 = vadd.f32 %v158, %v612
  %v614 = vpop.f32.mrb[0].mxu0
  %615 = vmatprep.mubr.bf16.mxu0 0
  %616 = vmatmul.mubr.bf16.gmra.mrb[0].mxu0 %v388
  %v617 = vpop.f32.mrb[0].mxu0
  %v618 = vadd.f32 %v158, %v617
  %v619 = vpop.f32.mrb[0].mxu0
  %v620 = vpop.f32.mrb[0].mxu0
  %v621 = vadd.f32 %v158, %v620
  %v622 = vpop.f32.mrb[0].mxu0
  %623 = vmatprep.mubr.bf16.mxu0 0
  %624 = vmatmul.mubr.bf16.gmra.mrb[0].mxu0 %v391
  %v625 = vpop.f32.mrb[0].mxu0
  %v626 = vadd.f32 %v158, %v625
  %v627 = vpop.f32.mrb[0].mxu0
  %v628 = vpop.f32.mrb[0].mxu0
  %v629 = vadd.f32 %v158, %v628
  %v630 = vpop.f32.mrb[0].mxu0
  %631 = vmatprep.mubr.bf16.mxu0 0
  %632 = vmatmul.mubr.bf16.gmra.mrb[0].mxu0 %v394
  %v633 = vpop.f32.mrb[0].mxu0
  %v634 = vadd.f32 %v158, %v633
  %v635 = vpop.f32.mrb[0].mxu0
  %v636 = vpop.f32.mrb[0].mxu0
  %v637 = vadd.f32 %v158, %v636
  %v638 = vpop.f32.mrb[0].mxu0
  %639 = vmatprep.mubr.bf16.mxu0 0
  %640 = vmatmul.mubr.bf16.gmra.mrb[0].mxu0 %v397
  %v641 = vpop.f32.mrb[0].mxu0
  %v642 = vadd.f32 %v158, %v641
  %v643 = vpop.f32.mrb[0].mxu0
  %v644 = vpop.f32.mrb[0].mxu0
  %v645 = vadd.f32 %v158, %v644
  %v646 = vpop.f32.mrb[0].mxu0
  %647 = vmatprep.mubr.bf16.mxu0 0
  %648 = vmatmul.mubr.bf16.gmra.mrb[0].mxu0 %v400
  %v649 = vpop.f32.mrb[0].mxu0
  %v650 = vadd.f32 %v158, %v649
  %v651 = vpop.f32.mrb[0].mxu0
  %v652 = vpop.f32.mrb[0].mxu0
  %v653 = vadd.f32 %v158, %v652
  %v654 = vpop.f32.mrb[0].mxu0
  %655 = vmatprep.mubr.bf16.mxu0 0
  %656 = vmatmul.mubr.bf16.gmra.mrb[0].mxu0 %v403
  %v657 = vpop.f32.mrb[0].mxu0
  %v658 = vadd.f32 %v158, %v657
  %v659 = vpop.f32.mrb[0].mxu0
  %v660 = vpop.f32.mrb[0].mxu0
  %v661 = vadd.f32 %v158, %v660
  %v662 = vpop.f32.mrb[0].mxu0
  %663 = vmatprep.mubr.bf16.mxu0 0
  %664 = vmatmul.mubr.bf16.gmra.mrb[0].mxu0 %v406
  %v665 = vpop.f32.mrb[0].mxu0
  %v666 = vadd.f32 %v158, %v665
  %v667 = vpop.f32.mrb[0].mxu0
  %v668 = vpop.f32.mrb[0].mxu0
  %v669 = vadd.f32 %v158, %v668
  %v670 = vpop.f32.mrb[0].mxu0
  %671 = vmatprep.mubr.bf16.mxu0 0
  %672 = vmatmul.mubr.bf16.gmra.mrb[0].mxu0 %v409
  %v673 = vpop.f32.mrb[0].mxu0
  %v674 = vadd.f32 %v158, %v673
  %v675 = vpop.f32.mrb[0].mxu0
  %v676 = vpop.f32.mrb[0].mxu0
  %v677 = vadd.f32 %v158, %v676
  %v678 = vpop.f32.mrb[0].mxu0
  %679 = vmatprep.mubr.bf16.mxu0 0
  %680 = vmatmul.mubr.bf16.gmra.mrb[0].mxu0 %v412
  %v681 = vpop.f32.mrb[0].mxu0
  %v682 = vadd.f32 %v158, %v681
  %v683 = vpop.f32.mrb[0].mxu0
  %v684 = vpop.f32.mrb[0].mxu0
  %v685 = vadd.f32 %v158, %v684
  %v686 = vpop.f32.mrb[0].mxu0
  %687 = vmatprep.mubr.bf16.mxu0 0
  %688 = vmatmul.mubr.bf16.gmra.mrb[0].mxu0 %v415
  %v689 = vpop.f32.mrb[0].mxu0
  %v690 = vadd.f32 %v158, %v689
  %v691 = vpop.f32.mrb[0].mxu0
  %v692 = vpop.f32.mrb[0].mxu0
  %v693 = vadd.f32 %v158, %v692
  %v694 = vpop.f32.mrb[0].mxu0
  %695 = vmatprep.mubr.bf16.mxu0 0
  %696 = vmatmul.mubr.bf16.gmra.mrb[0].mxu0 %v418
  %v697 = vpop.f32.mrb[0].mxu0
  %v698 = vadd.f32 %v158, %v697
  %v699 = vpop.f32.mrb[0].mxu0
  %v700 = vpop.f32.mrb[0].mxu0
  %v701 = vadd.f32 %v158, %v700
  %v702 = vpop.f32.mrb[0].mxu0
  %703 = vmatprep.mubr.bf16.mxu0 0
  %704 = vmatmul.mubr.bf16.gmra.mrb[0].mxu0 %v421
  %v705 = vpop.f32.mrb[0].mxu0
  %v706 = vadd.f32 %v158, %v705
  %v707 = vpop.f32.mrb[0].mxu0
  %v708 = vpop.f32.mrb[0].mxu0
  %v709 = vadd.f32 %v158, %v708
  %v710 = vpop.f32.mrb[0].mxu0
  %711 = vdwg.mxu0
  %v712 = vmax.f32 %v458, 0.0
  %v713 = vmax.f32 %v461, 0.0
  %v714 = vmax.f32 %v466, 0.0
  %v715 = vmax.f32 %v469, 0.0
  %v716 = vmax.f32 %v474, 0.0
  %v717 = vmax.f32 %v477, 0.0
  %v718 = vmax.f32 %v482, 0.0
  %v719 = vmax.f32 %v485, 0.0
  %v720 = vmax.f32 %v490, 0.0
  %v721 = vmax.f32 %v493, 0.0
  %v722 = vmax.f32 %v498, 0.0
  %v723 = vmax.f32 %v501, 0.0
  %v724 = vmax.f32 %v506, 0.0
  %v725 = vmax.f32 %v509, 0.0
  %v726 = vmax.f32 %v514, 0.0
  %v727 = vmax.f32 %v517, 0.0
  %v728 = vmax.f32 %v522, 0.0
  %v729 = vmax.f32 %v525, 0.0
  %v730 = vmax.f32 %v530, 0.0
  %v731 = vmax.f32 %v533, 0.0
  %v732 = vmax.f32 %v538, 0.0
  %v733 = vmax.f32 %v541, 0.0
  %v734 = vmax.f32 %v546, 0.0
  %v735 = vmax.f32 %v549, 0.0
  %v736 = vmax.f32 %v554, 0.0
  %v737 = vmax.f32 %v557, 0.0
  %v738 = vmax.f32 %v562, 0.0
  %v739 = vmax.f32 %v565, 0.0
  %v740 = vmax.f32 %v570, 0.0
  %v741 = vmax.f32 %v573, 0.0
  %v742 = vmax.f32 %v578, 0.0
  %v743 = vmax.f32 %v581, 0.0
  %v744 = vmax.f32 %v586, 0.0
  %v745 = vmax.f32 %v589, 0.0
  %v746 = vmax.f32 %v594, 0.0
  %v747 = vmax.f32 %v597, 0.0
  %v748 = vmax.f32 %v602, 0.0
  %v749 = vmax.f32 %v605, 0.0
  %v750 = vmax.f32 %v610, 0.0
  %v751 = vmax.f32 %v613, 0.0
  %v752 = vmax.f32 %v618, 0.0
  %v753 = vmax.f32 %v621, 0.0
  %v754 = vmax.f32 %v626, 0.0
  %v755 = vmax.f32 %v629, 0.0
  %v756 = vmax.f32 %v634, 0.0
  %v757 = vmax.f32 %v637, 0.0
  %v758 = vmax.f32 %v642, 0.0
  %v759 = vmax.f32 %v645, 0.0
  %v760 = vmax.f32 %v650, 0.0
  %v761 = vmax.f32 %v653, 0.0
  %v762 = vmax.f32 %v658, 0.0
  %v763 = vmax.f32 %v661, 0.0
  %v764 = vmax.f32 %v666, 0.0
  %v765 = vmax.f32 %v669, 0.0
  %v766 = vmax.f32 %v674, 0.0
  %v767 = vmax.f32 %v677, 0.0
  %v768 = vmax.f32 %v682, 0.0
  %v769 = vmax.f32 %v685, 0.0
  %v770 = vmax.f32 %v690, 0.0
  %v771 = vmax.f32 %v693, 0.0
  %v772 = vmax.f32 %v698, 0.0
  %v773 = vmax.f32 %v701, 0.0
  %v774 = vmax.f32 %v706, 0.0
  %v775 = vmax.f32 %v709, 0.0
  %v776 = vpack.c.bf16 %v713, %v712
  %v777 = vpack.c.bf16 %v715, %v714
  %v778 = vpack.c.bf16 %v717, %v716
  %v779 = vpack.c.bf16 %v719, %v718
  %v780 = vpack.c.bf16 %v721, %v720
  %v781 = vpack.c.bf16 %v723, %v722
  %v782 = vpack.c.bf16 %v725, %v724
  %v783 = vpack.c.bf16 %v727, %v726
  %v784 = vpack.c.bf16 %v729, %v728
  %v785 = vpack.c.bf16 %v731, %v730
  %v786 = vpack.c.bf16 %v733, %v732
  %v787 = vpack.c.bf16 %v735, %v734
  %v788 = vpack.c.bf16 %v737, %v736
  %v789 = vpack.c.bf16 %v739, %v738
  %v790 = vpack.c.bf16 %v741, %v740
  %v791 = vpack.c.bf16 %v743, %v742
  %v792 = vpack.c.bf16 %v745, %v744
  %v793 = vpack.c.bf16 %v747, %v746
  %v794 = vpack.c.bf16 %v749, %v748
  %v795 = vpack.c.bf16 %v751, %v750
  %v796 = vpack.c.bf16 %v753, %v752
  %v797 = vpack.c.bf16 %v755, %v754
  %v798 = vpack.c.bf16 %v757, %v756
  %v799 = vpack.c.bf16 %v759, %v758
  %v800 = vpack.c.bf16 %v761, %v760
  %v801 = vpack.c.bf16 %v763, %v762
  %v802 = vpack.c.bf16 %v765, %v764
  %v803 = vpack.c.bf16 %v767, %v766
  %v804 = vpack.c.bf16 %v769, %v768
  %v805 = vpack.c.bf16 %v771, %v770
  %v806 = vpack.c.bf16 %v773, %v772
  %v807 = vpack.c.bf16 %v775, %v774
  %v808 = vld [vmem:[%s4] sm:$0xf]
  %v809 = vld [vmem:[%s4 + $0x4] sm:$0xf]
  %v810 = vld [vmem:[%s4 + $0x8] sm:$0xf]
  %v811 = vld [vmem:[%s4 + $0xc] sm:$0xf]
  %v812 = vld [vmem:[%s4 + $0x10] sm:$0xf]
  %v813 = vld [vmem:[%s4 + $0x14] sm:$0xf]
  %v814 = vld [vmem:[%s4 + $0x18] sm:$0xf]
  %v815 = vld [vmem:[%s4 + $0x1c] sm:$0xf]
  %v816 = vld [vmem:[%s4 + $0x20] sm:$0xf]
  %v817 = vld [vmem:[%s4 + $0x24] sm:$0xf]
  %v818 = vld [vmem:[%s4 + $0x28] sm:$0xf]
  %v819 = vld [vmem:[%s4 + $0x2c] sm:$0xf]
  %v820 = vld [vmem:[%s4 + $0x30] sm:$0xf]
  %v821 = vld [vmem:[%s4 + $0x34] sm:$0xf]
  %v822 = vld [vmem:[%s4 + $0x38] sm:$0xf]
  %v823 = vld [vmem:[%s4 + $0x3c] sm:$0xf]
  %v824 = vld [vmem:[%s5] sm:$0x1]
  %v826 = vlaneseq
  %v827 = vshrl.u32 %v826, 7
  %v828 = vsub.s32 0, %v827
  %v829 = vrot.slane %v824, %v828
  %v847 = vunpack.c.l.b16 %v808
  %v848 = vunpack.c.l.b16 %v809
  %v849 = vunpack.c.l.b16 %v810
  %v850 = vunpack.c.l.b16 %v811
  %v851 = vunpack.c.l.b16 %v812
  %v852 = vunpack.c.l.b16 %v813
  %v853 = vunpack.c.l.b16 %v814
  %v854 = vunpack.c.l.b16 %v815
  %v855 = vunpack.c.l.b16 %v816
  %v856 = vunpack.c.l.b16 %v817
  %v857 = vunpack.c.l.b16 %v818
  %v858 = vunpack.c.l.b16 %v819
  %v859 = vunpack.c.l.b16 %v820
  %v860 = vunpack.c.l.b16 %v821
  %v861 = vunpack.c.l.b16 %v822
  %v862 = vunpack.c.l.b16 %v823
  %v863 = vpack.c.b16 %v848, %v847
  %v864 = vpack.c.b16 %v850, %v849
  %v865 = vpack.c.b16 %v852, %v851
  %v866 = vpack.c.b16 %v854, %v853
  %v867 = vpack.c.b16 %v856, %v855
  %v868 = vpack.c.b16 %v858, %v857
  %v869 = vpack.c.b16 %v860, %v859
  %v870 = vpack.c.b16 %v862, %v861
  %879 = vmatprep.subr.bf16.mxu0 0
  %880 = vmatpush1.bf16.msra.mxu0 %v863
  %881 = vmatprep.subr.bf16.mxu0 0
  %882 = vmatpush1.bf16.msra.mxu0 %v864
  %883 = vmatprep.subr.bf16.mxu0 0
  %884 = vmatpush1.bf16.msra.mxu0 %v865
  %885 = vmatprep.subr.bf16.mxu0 0
  %886 = vmatpush1.bf16.msra.mxu0 %v866
  %887 = vmatprep.subr.bf16.mxu0 0
  %888 = vmatpush1.bf16.msra.mxu0 %v867
  %889 = vmatprep.subr.bf16.mxu0 0
  %890 = vmatpush1.bf16.msra.mxu0 %v868
  %891 = vmatprep.subr.bf16.mxu0 0
  %892 = vmatpush1.bf16.msra.mxu0 %v869
  %893 = vmatprep.subr.bf16.mxu0 0
  %894 = vmatpush1.bf16.msra.mxu0 %v870
  %895 = vmatprep.subr.bf16.mxu0 0
  %896 = vmatpush1.bf16.msra.mxu0 0
  %897 = vmatprep.subr.bf16.mxu0 0
  %898 = vmatpush1.bf16.msra.mxu0 0
  %899 = vmatprep.subr.bf16.mxu0 0
  %900 = vmatpush1.bf16.msra.mxu0 0
  %901 = vmatprep.subr.bf16.mxu0 0
  %902 = vmatpush1.bf16.msra.mxu0 0
  %903 = vmatprep.subr.bf16.mxu0 0
  %904 = vmatpush1.bf16.msra.mxu0 0
  %905 = vmatprep.subr.bf16.mxu0 0
  %906 = vmatpush1.bf16.msra.mxu0 0
  %907 = vmatprep.subr.bf16.mxu0 0
  %908 = vmatpush1.bf16.msra.mxu0 0
  %909 = vmatprep.subr.bf16.mxu0 0
  %910 = vmatpush1.bf16.msra.mxu0 0
  %911 = vmatprep.mubr.bf16.mxu0 0
  %912 = vmatmul.mubr.bf16.gmra.mrb[0].mxu0 %v776
  %v913 = vpop.f32.mrb[0].mxu0
  %v914 = vadd.f32 %v829, %v913
  %v915 = vpop.f32.mrb[0].mxu0
  %v916 = vpop.f32.mrb[0].mxu0
  %v917 = vadd.f32 %v829, %v916
  %v918 = vpop.f32.mrb[0].mxu0
  %919 = vmatprep.mubr.bf16.mxu0 0
  %920 = vmatmul.mubr.bf16.gmra.mrb[0].mxu0 %v777
  %v921 = vpop.f32.mrb[0].mxu0
  %v922 = vadd.f32 %v829, %v921
  %v923 = vpop.f32.mrb[0].mxu0
  %v924 = vpop.f32.mrb[0].mxu0
  %v925 = vadd.f32 %v829, %v924
  %v926 = vpop.f32.mrb[0].mxu0
  %927 = vmatprep.mubr.bf16.mxu0 0
  %928 = vmatmul.mubr.bf16.gmra.mrb[0].mxu0 %v778
  %v929 = vpop.f32.mrb[0].mxu0
  %v930 = vadd.f32 %v829, %v929
  %v931 = vpop.f32.mrb[0].mxu0
  %v932 = vpop.f32.mrb[0].mxu0
  %v933 = vadd.f32 %v829, %v932
  %v934 = vpop.f32.mrb[0].mxu0
  %935 = vmatprep.mubr.bf16.mxu0 0
  %936 = vmatmul.mubr.bf16.gmra.mrb[0].mxu0 %v779
  %v937 = vpop.f32.mrb[0].mxu0
  %v938 = vadd.f32 %v829, %v937
  %v939 = vpop.f32.mrb[0].mxu0
  %v940 = vpop.f32.mrb[0].mxu0
  %v941 = vadd.f32 %v829, %v940
  %v942 = vpop.f32.mrb[0].mxu0
  %943 = vmatprep.mubr.bf16.mxu0 0
  %944 = vmatmul.mubr.bf16.gmra.mrb[0].mxu0 %v780
  %v945 = vpop.f32.mrb[0].mxu0
  %v946 = vadd.f32 %v829, %v945
  %v947 = vpop.f32.mrb[0].mxu0
  %v948 = vpop.f32.mrb[0].mxu0
  %v949 = vadd.f32 %v829, %v948
  %v950 = vpop.f32.mrb[0].mxu0
  %951 = vmatprep.mubr.bf16.mxu0 0
  %952 = vmatmul.mubr.bf16.gmra.mrb[0].mxu0 %v781
  %v953 = vpop.f32.mrb[0].mxu0
  %v954 = vadd.f32 %v829, %v953
  %v955 = vpop.f32.mrb[0].mxu0
  %v956 = vpop.f32.mrb[0].mxu0
  %v957 = vadd.f32 %v829, %v956
  %v958 = vpop.f32.mrb[0].mxu0
  %959 = vmatprep.mubr.bf16.mxu0 0
  %960 = vmatmul.mubr.bf16.gmra.mrb[0].mxu0 %v782
  %v961 = vpop.f32.mrb[0].mxu0
  %v962 = vadd.f32 %v829, %v961
  %v963 = vpop.f32.mrb[0].mxu0
  %v964 = vpop.f32.mrb[0].mxu0
  %v965 = vadd.f32 %v829, %v964
  %v966 = vpop.f32.mrb[0].mxu0
  %967 = vmatprep.mubr.bf16.mxu0 0
  %968 = vmatmul.mubr.bf16.gmra.mrb[0].mxu0 %v783
  %v969 = vpop.f32.mrb[0].mxu0
  %v970 = vadd.f32 %v829, %v969
  %v971 = vpop.f32.mrb[0].mxu0
  %v972 = vpop.f32.mrb[0].mxu0
  %v973 = vadd.f32 %v829, %v972
  %v974 = vpop.f32.mrb[0].mxu0
  %975 = vmatprep.mubr.bf16.mxu0 0
  %976 = vmatmul.mubr.bf16.gmra.mrb[0].mxu0 %v784
  %v977 = vpop.f32.mrb[0].mxu0
  %v978 = vadd.f32 %v829, %v977
  %v979 = vpop.f32.mrb[0].mxu0
  %v980 = vpop.f32.mrb[0].mxu0
  %v981 = vadd.f32 %v829, %v980
  %v982 = vpop.f32.mrb[0].mxu0
  %983 = vmatprep.mubr.bf16.mxu0 0
  %984 = vmatmul.mubr.bf16.gmra.mrb[0].mxu0 %v785
  %v985 = vpop.f32.mrb[0].mxu0
  %v986 = vadd.f32 %v829, %v985
  %v987 = vpop.f32.mrb[0].mxu0
  %v988 = vpop.f32.mrb[0].mxu0
  %v989 = vadd.f32 %v829, %v988
  %v990 = vpop.f32.mrb[0].mxu0
  %991 = vmatprep.mubr.bf16.mxu0 0
  %992 = vmatmul.mubr.bf16.gmra.mrb[0].mxu0 %v786
  %v993 = vpop.f32.mrb[0].mxu0
  %v994 = vadd.f32 %v829, %v993
  %v995 = vpop.f32.mrb[0].mxu0
  %v996 = vpop.f32.mrb[0].mxu0
  %v997 = vadd.f32 %v829, %v996
  %v998 = vpop.f32.mrb[0].mxu0
  %999 = vmatprep.mubr.bf16.mxu0 0
  %1000 = vmatmul.mubr.bf16.gmra.mrb[0].mxu0 %v787
  %v1001 = vpop.f32.mrb[0].mxu0
  %v1002 = vadd.f32 %v829, %v1001
  %v1003 = vpop.f32.mrb[0].mxu0
  %v1004 = vpop.f32.mrb[0].mxu0
  %v1005 = vadd.f32 %v829, %v1004
  %v1006 = vpop.f32.mrb[0].mxu0
  %1007 = vmatprep.mubr.bf16.mxu0 0
  %1008 = vmatmul.mubr.bf16.gmra.mrb[0].mxu0 %v788
  %v1009 = vpop.f32.mrb[0].mxu0
  %v1010 = vadd.f32 %v829, %v1009
  %v1011 = vpop.f32.mrb[0].mxu0
  %v1012 = vpop.f32.mrb[0].mxu0
  %v1013 = vadd.f32 %v829, %v1012
  %v1014 = vpop.f32.mrb[0].mxu0
  %1015 = vmatprep.mubr.bf16.mxu0 0
  %1016 = vmatmul.mubr.bf16.gmra.mrb[0].mxu0 %v789
  %v1017 = vpop.f32.mrb[0].mxu0
  %v1018 = vadd.f32 %v829, %v1017
  %v1019 = vpop.f32.mrb[0].mxu0
  %v1020 = vpop.f32.mrb[0].mxu0
  %v1021 = vadd.f32 %v829, %v1020
  %v1022 = vpop.f32.mrb[0].mxu0
  %1023 = vmatprep.mubr.bf16.mxu0 0
  %1024 = vmatmul.mubr.bf16.gmra.mrb[0].mxu0 %v790
  %v1025 = vpop.f32.mrb[0].mxu0
  %v1026 = vadd.f32 %v829, %v1025
  %v1027 = vpop.f32.mrb[0].mxu0
  %v1028 = vpop.f32.mrb[0].mxu0
  %v1029 = vadd.f32 %v829, %v1028
  %v1030 = vpop.f32.mrb[0].mxu0
  %1031 = vmatprep.mubr.bf16.mxu0 0
  %1032 = vmatmul.mubr.bf16.gmra.mrb[0].mxu0 %v791
  %v1033 = vpop.f32.mrb[0].mxu0
  %v1034 = vadd.f32 %v829, %v1033
  %v1035 = vpop.f32.mrb[0].mxu0
  %v1036 = vpop.f32.mrb[0].mxu0
  %v1037 = vadd.f32 %v829, %v1036
  %v1038 = vpop.f32.mrb[0].mxu0
  %1039 = vmatprep.mubr.bf16.mxu0 0
  %1040 = vmatmul.mubr.bf16.gmra.mrb[0].mxu0 %v792
  %v1041 = vpop.f32.mrb[0].mxu0
  %v1042 = vadd.f32 %v829, %v1041
  %v1043 = vpop.f32.mrb[0].mxu0
  %v1044 = vpop.f32.mrb[0].mxu0
  %v1045 = vadd.f32 %v829, %v1044
  %v1046 = vpop.f32.mrb[0].mxu0
  %1047 = vmatprep.mubr.bf16.mxu0 0
  %1048 = vmatmul.mubr.bf16.gmra.mrb[0].mxu0 %v793
  %v1049 = vpop.f32.mrb[0].mxu0
  %v1050 = vadd.f32 %v829, %v1049
  %v1051 = vpop.f32.mrb[0].mxu0
  %v1052 = vpop.f32.mrb[0].mxu0
  %v1053 = vadd.f32 %v829, %v1052
  %v1054 = vpop.f32.mrb[0].mxu0
  %1055 = vmatprep.mubr.bf16.mxu0 0
  %1056 = vmatmul.mubr.bf16.gmra.mrb[0].mxu0 %v794
  %v1057 = vpop.f32.mrb[0].mxu0
  %v1058 = vadd.f32 %v829, %v1057
  %v1059 = vpop.f32.mrb[0].mxu0
  %v1060 = vpop.f32.mrb[0].mxu0
  %v1061 = vadd.f32 %v829, %v1060
  %v1062 = vpop.f32.mrb[0].mxu0
  %1063 = vmatprep.mubr.bf16.mxu0 0
  %1064 = vmatmul.mubr.bf16.gmra.mrb[0].mxu0 %v795
  %v1065 = vpop.f32.mrb[0].mxu0
  %v1066 = vadd.f32 %v829, %v1065
  %v1067 = vpop.f32.mrb[0].mxu0
  %v1068 = vpop.f32.mrb[0].mxu0
  %v1069 = vadd.f32 %v829, %v1068
  %v1070 = vpop.f32.mrb[0].mxu0
  %1071 = vmatprep.mubr.bf16.mxu0 0
  %1072 = vmatmul.mubr.bf16.gmra.mrb[0].mxu0 %v796
  %v1073 = vpop.f32.mrb[0].mxu0
  %v1074 = vadd.f32 %v829, %v1073
  %v1075 = vpop.f32.mrb[0].mxu0
  %v1076 = vpop.f32.mrb[0].mxu0
  %v1077 = vadd.f32 %v829, %v1076
  %v1078 = vpop.f32.mrb[0].mxu0
  %1079 = vmatprep.mubr.bf16.mxu0 0
  %1080 = vmatmul.mubr.bf16.gmra.mrb[0].mxu0 %v797
  %v1081 = vpop.f32.mrb[0].mxu0
  %v1082 = vadd.f32 %v829, %v1081
  %v1083 = vpop.f32.mrb[0].mxu0
  %v1084 = vpop.f32.mrb[0].mxu0
  %v1085 = vadd.f32 %v829, %v1084
  %v1086 = vpop.f32.mrb[0].mxu0
  %1087 = vmatprep.mubr.bf16.mxu0 0
  %1088 = vmatmul.mubr.bf16.gmra.mrb[0].mxu0 %v798
  %v1089 = vpop.f32.mrb[0].mxu0
  %v1090 = vadd.f32 %v829, %v1089
  %v1091 = vpop.f32.mrb[0].mxu0
  %v1092 = vpop.f32.mrb[0].mxu0
  %v1093 = vadd.f32 %v829, %v1092
  %v1094 = vpop.f32.mrb[0].mxu0
  %1095 = vmatprep.mubr.bf16.mxu0 0
  %1096 = vmatmul.mubr.bf16.gmra.mrb[0].mxu0 %v799
  %v1097 = vpop.f32.mrb[0].mxu0
  %v1098 = vadd.f32 %v829, %v1097
  %v1099 = vpop.f32.mrb[0].mxu0
  %v1100 = vpop.f32.mrb[0].mxu0
  %v1101 = vadd.f32 %v829, %v1100
  %v1102 = vpop.f32.mrb[0].mxu0
  %1103 = vmatprep.mubr.bf16.mxu0 0
  %1104 = vmatmul.mubr.bf16.gmra.mrb[0].mxu0 %v800
  %v1105 = vpop.f32.mrb[0].mxu0
  %v1106 = vadd.f32 %v829, %v1105
  %v1107 = vpop.f32.mrb[0].mxu0
  %v1108 = vpop.f32.mrb[0].mxu0
  %v1109 = vadd.f32 %v829, %v1108
  %v1110 = vpop.f32.mrb[0].mxu0
  %1111 = vmatprep.mubr.bf16.mxu0 0
  %1112 = vmatmul.mubr.bf16.gmra.mrb[0].mxu0 %v801
  %v1113 = vpop.f32.mrb[0].mxu0
  %v1114 = vadd.f32 %v829, %v1113
  %v1115 = vpop.f32.mrb[0].mxu0
  %v1116 = vpop.f32.mrb[0].mxu0
  %v1117 = vadd.f32 %v829, %v1116
  %v1118 = vpop.f32.mrb[0].mxu0
  %1119 = vmatprep.mubr.bf16.mxu0 0
  %1120 = vmatmul.mubr.bf16.gmra.mrb[0].mxu0 %v802
  %v1121 = vpop.f32.mrb[0].mxu0
  %v1122 = vadd.f32 %v829, %v1121
  %v1123 = vpop.f32.mrb[0].mxu0
  %v1124 = vpop.f32.mrb[0].mxu0
  %v1125 = vadd.f32 %v829, %v1124
  %v1126 = vpop.f32.mrb[0].mxu0
  %1127 = vmatprep.mubr.bf16.mxu0 0
  %1128 = vmatmul.mubr.bf16.gmra.mrb[0].mxu0 %v803
  %v1129 = vpop.f32.mrb[0].mxu0
  %v1130 = vadd.f32 %v829, %v1129
  %v1131 = vpop.f32.mrb[0].mxu0
  %v1132 = vpop.f32.mrb[0].mxu0
  %v1133 = vadd.f32 %v829, %v1132
  %v1134 = vpop.f32.mrb[0].mxu0
  %1135 = vmatprep.mubr.bf16.mxu0 0
  %1136 = vmatmul.mubr.bf16.gmra.mrb[0].mxu0 %v804
  %v1137 = vpop.f32.mrb[0].mxu0
  %v1138 = vadd.f32 %v829, %v1137
  %v1139 = vpop.f32.mrb[0].mxu0
  %v1140 = vpop.f32.mrb[0].mxu0
  %v1141 = vadd.f32 %v829, %v1140
  %v1142 = vpop.f32.mrb[0].mxu0
  %1143 = vmatprep.mubr.bf16.mxu0 0
  %1144 = vmatmul.mubr.bf16.gmra.mrb[0].mxu0 %v805
  %v1145 = vpop.f32.mrb[0].mxu0
  %v1146 = vadd.f32 %v829, %v1145
  %v1147 = vpop.f32.mrb[0].mxu0
  %v1148 = vpop.f32.mrb[0].mxu0
  %v1149 = vadd.f32 %v829, %v1148
  %v1150 = vpop.f32.mrb[0].mxu0
  %1151 = vmatprep.mubr.bf16.mxu0 0
  %1152 = vmatmul.mubr.bf16.gmra.mrb[0].mxu0 %v806
  %v1153 = vpop.f32.mrb[0].mxu0
  %v1154 = vadd.f32 %v829, %v1153
  %v1155 = vpop.f32.mrb[0].mxu0
  %v1156 = vpop.f32.mrb[0].mxu0
  %v1157 = vadd.f32 %v829, %v1156
  %v1158 = vpop.f32.mrb[0].mxu0
  %1159 = vmatprep.mubr.bf16.mxu0 0
  %1160 = vmatmul.mubr.bf16.gmra.mrb[0].mxu0 %v807
  %v1161 = vpop.f32.mrb[0].mxu0
  %v1162 = vadd.f32 %v829, %v1161
  %v1163 = vpop.f32.mrb[0].mxu0
  %v1164 = vpop.f32.mrb[0].mxu0
  %v1165 = vadd.f32 %v829, %v1164
  %v1166 = vpop.f32.mrb[0].mxu0
  %1167 = vdwg.mxu0
  %v1168 = vld [vmem:[%s0] sm:$0xf]
  %v1169 = vld [vmem:[#allocation2] sm:$0xff]
  %v1170 = vld [vmem:[#allocation2 + $0x8] sm:$0xff]
  %v1171 = vld [vmem:[#allocation2 + $0x10] sm:$0xff]
  %v1172 = vld [vmem:[#allocation2 + $0x18] sm:$0xff]
  %v1173 = vld [vmem:[#allocation2 + $0x20] sm:$0xff]
  %v1174 = vld [vmem:[#allocation2 + $0x28] sm:$0xff]
  %v1175 = vld [vmem:[#allocation2 + $0x30] sm:$0xff]
  %v1176 = vld [vmem:[#allocation2 + $0x38] sm:$0xff]
  %v1177 = vld [vmem:[#allocation2 + $0x40] sm:$0xff]
  %v1178 = vld [vmem:[#allocation2 + $0x48] sm:$0xff]
  %v1179 = vld [vmem:[#allocation2 + $0x50] sm:$0xff]
  %v1180 = vld [vmem:[#allocation2 + $0x58] sm:$0xff]
  %v1181 = vld [vmem:[#allocation2 + $0x60] sm:$0xff]
  %v1182 = vld [vmem:[#allocation2 + $0x68] sm:$0xff]
  %v1183 = vld [vmem:[#allocation2 + $0x70] sm:$0xff]
  %v1184 = vld [vmem:[#allocation2 + $0x78] sm:$0xff]
  %v1185 = vld [vmem:[#allocation2 + $0x80] sm:$0xff]
  %v1186 = vld [vmem:[#allocation2 + $0x88] sm:$0xff]
  %v1187 = vld [vmem:[#allocation2 + $0x90] sm:$0xff]
  %v1188 = vld [vmem:[#allocation2 + $0x98] sm:$0xff]
  %v1189 = vld [vmem:[#allocation2 + $0xa0] sm:$0xff]
  %v1190 = vld [vmem:[#allocation2 + $0xa8] sm:$0xff]
  %v1191 = vld [vmem:[#allocation2 + $0xb0] sm:$0xff]
  %v1192 = vld [vmem:[#allocation2 + $0xb8] sm:$0xff]
  %v1193 = vld [vmem:[#allocation2 + $0xc0] sm:$0xff]
  %v1194 = vld [vmem:[#allocation2 + $0xc8] sm:$0xff]
  %v1195 = vld [vmem:[#allocation2 + $0xd0] sm:$0xff]
  %v1196 = vld [vmem:[#allocation2 + $0xd8] sm:$0xff]
  %v1197 = vld [vmem:[#allocation2 + $0xe0] sm:$0xff]
  %v1198 = vld [vmem:[#allocation2 + $0xe8] sm:$0xff]
  %v1199 = vld [vmem:[#allocation2 + $0xf0] sm:$0xff]
  %v1200 = vld [vmem:[#allocation2 + $0xf8] sm:$0xff]
  %v1201 = vlaneseq
  %v1202 = vshrl.u32 %v1201, 7
  %v1203 = vsub.s32 0, %v1202
  %v1204 = vrot.slane %v1168, %v1203
  %v1205 = vlaneseq
  %v1206 = vshrl.u32 %v1205, 7
  %v1207 = vsub.s32 1, %v1206
  %v1208 = vrot.slane %v1168, %v1207
  %v1209 = vlaneseq
  %v1210 = vshrl.u32 %v1209, 7
  %v1211 = vsub.s32 2, %v1210
  %v1212 = vrot.slane %v1168, %v1211
  %v1213 = vlaneseq
  %v1214 = vshrl.u32 %v1213, 7
  %v1215 = vsub.s32 3, %v1214
  %v1216 = vrot.slane %v1168, %v1215
  %vm1217 = vcmp.eq.s32.totalorder %v1204, %v1169
  %vm1218 = vcmp.eq.s32.totalorder %v1208, %v1170
  %vm1219 = vcmp.eq.s32.totalorder %v1212, %v1171
  %vm1220 = vcmp.eq.s32.totalorder %v1216, %v1172
  %vm1221 = vcmp.eq.s32.totalorder %v1204, %v1173
  %vm1222 = vcmp.eq.s32.totalorder %v1208, %v1174
  %vm1223 = vcmp.eq.s32.totalorder %v1212, %v1175
  %vm1224 = vcmp.eq.s32.totalorder %v1216, %v1176
  %vm1225 = vcmp.eq.s32.totalorder %v1204, %v1177
  %vm1226 = vcmp.eq.s32.totalorder %v1208, %v1178
  %vm1227 = vcmp.eq.s32.totalorder %v1212, %v1179
  %vm1228 = vcmp.eq.s32.totalorder %v1216, %v1180
  %vm1229 = vcmp.eq.s32.totalorder %v1204, %v1181
  %vm1230 = vcmp.eq.s32.totalorder %v1208, %v1182
  %vm1231 = vcmp.eq.s32.totalorder %v1212, %v1183
  %vm1232 = vcmp.eq.s32.totalorder %v1216, %v1184
  %vm1233 = vcmp.eq.s32.totalorder %v1204, %v1185
  %vm1234 = vcmp.eq.s32.totalorder %v1208, %v1186
  %vm1235 = vcmp.eq.s32.totalorder %v1212, %v1187
  %vm1236 = vcmp.eq.s32.totalorder %v1216, %v1188
  %vm1237 = vcmp.eq.s32.totalorder %v1204, %v1189
  %vm1238 = vcmp.eq.s32.totalorder %v1208, %v1190
  %vm1239 = vcmp.eq.s32.totalorder %v1212, %v1191
  %vm1240 = vcmp.eq.s32.totalorder %v1216, %v1192
  %vm1241 = vcmp.eq.s32.totalorder %v1204, %v1193
  %vm1242 = vcmp.eq.s32.totalorder %v1208, %v1194
  %vm1243 = vcmp.eq.s32.totalorder %v1212, %v1195
  %vm1244 = vcmp.eq.s32.totalorder %v1216, %v1196
  %vm1245 = vcmp.eq.s32.totalorder %v1204, %v1197
  %vm1246 = vcmp.eq.s32.totalorder %v1208, %v1198
  %vm1247 = vcmp.eq.s32.totalorder %v1212, %v1199
  %vm1248 = vcmp.eq.s32.totalorder %v1216, %v1200
  %v1249 = vsel %vm1217, 1, 0
  %v1250 = vsel %vm1218, 1, 0
  %v1251 = vsel %vm1219, 1, 0
  %v1252 = vsel %vm1220, 1, 0
  %v1253 = vsel %vm1221, 1, 0
  %v1254 = vsel %vm1222, 1, 0
  %v1255 = vsel %vm1223, 1, 0
  %v1256 = vsel %vm1224, 1, 0
  %v1257 = vsel %vm1225, 1, 0
  %v1258 = vsel %vm1226, 1, 0
  %v1259 = vsel %vm1227, 1, 0
  %v1260 = vsel %vm1228, 1, 0
  %v1261 = vsel %vm1229, 1, 0
  %v1262 = vsel %vm1230, 1, 0
  %v1263 = vsel %vm1231, 1, 0
  %v1264 = vsel %vm1232, 1, 0
  %v1265 = vsel %vm1233, 1, 0
  %v1266 = vsel %vm1234, 1, 0
  %v1267 = vsel %vm1235, 1, 0
  %v1268 = vsel %vm1236, 1, 0
  %v1269 = vsel %vm1237, 1, 0
  %v1270 = vsel %vm1238, 1, 0
  %v1271 = vsel %vm1239, 1, 0
  %v1272 = vsel %vm1240, 1, 0
  %v1273 = vsel %vm1241, 1, 0
  %v1274 = vsel %vm1242, 1, 0
  %v1275 = vsel %vm1243, 1, 0
  %v1276 = vsel %vm1244, 1, 0
  %v1277 = vsel %vm1245, 1, 0
  %v1278 = vsel %vm1246, 1, 0
  %v1279 = vsel %vm1247, 1, 0
  %v1280 = vsel %vm1248, 1, 0
  %v1281 = vcvt.s32.f32 %v1249
  %v1282 = vcvt.s32.f32 %v1250
  %v1283 = vcvt.s32.f32 %v1251
  %v1284 = vcvt.s32.f32 %v1252
  %v1285 = vcvt.s32.f32 %v1253
  %v1286 = vcvt.s32.f32 %v1254
  %v1287 = vcvt.s32.f32 %v1255
  %v1288 = vcvt.s32.f32 %v1256
  %v1289 = vcvt.s32.f32 %v1257
  %v1290 = vcvt.s32.f32 %v1258
  %v1291 = vcvt.s32.f32 %v1259
  %v1292 = vcvt.s32.f32 %v1260
  %v1293 = vcvt.s32.f32 %v1261
  %v1294 = vcvt.s32.f32 %v1262
  %v1295 = vcvt.s32.f32 %v1263
  %v1296 = vcvt.s32.f32 %v1264
  %v1297 = vcvt.s32.f32 %v1265
  %v1298 = vcvt.s32.f32 %v1266
  %v1299 = vcvt.s32.f32 %v1267
  %v1300 = vcvt.s32.f32 %v1268
  %v1301 = vcvt.s32.f32 %v1269
  %v1302 = vcvt.s32.f32 %v1270
  %v1303 = vcvt.s32.f32 %v1271
  %v1304 = vcvt.s32.f32 %v1272
  %v1305 = vcvt.s32.f32 %v1273
  %v1306 = vcvt.s32.f32 %v1274
  %v1307 = vcvt.s32.f32 %v1275
  %v1308 = vcvt.s32.f32 %v1276
  %v1309 = vcvt.s32.f32 %v1277
  %v1310 = vcvt.s32.f32 %v1278
  %v1311 = vcvt.s32.f32 %v1279
  %v1312 = vcvt.s32.f32 %v1280
  %v1313 = vpack.c.bf16 %v1285, %v1281
  %v1314 = vpack.c.bf16 %v1286, %v1282
  %v1315 = vpack.c.bf16 %v1287, %v1283
  %v1316 = vpack.c.bf16 %v1288, %v1284
  %v1317 = vpack.c.bf16 %v1293, %v1289
  %v1318 = vpack.c.bf16 %v1294, %v1290
  %v1319 = vpack.c.bf16 %v1295, %v1291
  %v1320 = vpack.c.bf16 %v1296, %v1292
  %v1321 = vpack.c.bf16 %v1301, %v1297
  %v1322 = vpack.c.bf16 %v1302, %v1298
  %v1323 = vpack.c.bf16 %v1303, %v1299
  %v1324 = vpack.c.bf16 %v1304, %v1300
  %v1325 = vpack.c.bf16 %v1309, %v1305
  %v1326 = vpack.c.bf16 %v1310, %v1306
  %v1327 = vpack.c.bf16 %v1311, %v1307
  %v1328 = vpack.c.bf16 %v1312, %v1308
  %v1329 = vld [vmem:[%s6] sm:$0xff]
  %v1330 = vld [vmem:[%s6 + $0x8] sm:$0xff]
  %v1331 = vld [vmem:[%s6 + $0x10] sm:$0xff]
  %v1332 = vld [vmem:[%s6 + $0x18] sm:$0xff]
  %v1333 = vld [vmem:[%s6 + $0x20] sm:$0xff]
  %v1334 = vld [vmem:[%s6 + $0x28] sm:$0xff]
  %v1335 = vld [vmem:[%s6 + $0x30] sm:$0xff]
  %v1336 = vld [vmem:[%s6 + $0x38] sm:$0xff]
  %v1337 = vpack.c.bf16 %v917, %v914
  %v1338 = vpack.c.bf16 %v925, %v922
  %v1339 = vpack.c.bf16 %v933, %v930
  %v1340 = vpack.c.bf16 %v941, %v938
  %v1341 = vpack.c.bf16 %v949, %v946
  %v1342 = vpack.c.bf16 %v957, %v954
  %v1343 = vpack.c.bf16 %v965, %v962
  %v1344 = vpack.c.bf16 %v973, %v970
  %v1345 = vpack.c.bf16 %v981, %v978
  %v1346 = vpack.c.bf16 %v989, %v986
  %v1347 = vpack.c.bf16 %v997, %v994
  %v1348 = vpack.c.bf16 %v1005, %v1002
  %v1349 = vpack.c.bf16 %v1013, %v1010
  %v1350 = vpack.c.bf16 %v1021, %v1018
  %v1351 = vpack.c.bf16 %v1029, %v1026
  %v1352 = vpack.c.bf16 %v1037, %v1034
  %v1353 = vpack.c.bf16 %v1045, %v1042
  %v1354 = vpack.c.bf16 %v1053, %v1050
  %v1355 = vpack.c.bf16 %v1061, %v1058
  %v1356 = vpack.c.bf16 %v1069, %v1066
  %v1357 = vpack.c.bf16 %v1077, %v1074
  %v1358 = vpack.c.bf16 %v1085, %v1082
  %v1359 = vpack.c.bf16 %v1093, %v1090
  %v1360 = vpack.c.bf16 %v1101, %v1098
  %v1361 = vpack.c.bf16 %v1109, %v1106
  %v1362 = vpack.c.bf16 %v1117, %v1114
  %v1363 = vpack.c.bf16 %v1125, %v1122
  %v1364 = vpack.c.bf16 %v1133, %v1130
  %v1365 = vpack.c.bf16 %v1141, %v1138
  %v1366 = vpack.c.bf16 %v1149, %v1146
  %v1367 = vpack.c.bf16 %v1157, %v1154
  %v1368 = vpack.c.bf16 %v1165, %v1162
  %1369 = vmatprep.subr.bf16.mxu0 0
  %1370 = vmatpush1.bf16.msra.mxu0 %v1337
  %1371 = vmatprep.subr.bf16.mxu0 0
  %1372 = vmatpush1.bf16.msra.mxu0 %v1338
  %1373 = vmatprep.subr.bf16.mxu0 0
  %1374 = vmatpush1.bf16.msra.mxu0 %v1339
  %1375 = vmatprep.subr.bf16.mxu0 0
  %1376 = vmatpush1.bf16.msra.mxu0 %v1340
  %1377 = vmatprep.subr.bf16.mxu0 0
  %1378 = vmatpush1.bf16.msra.mxu0 %v1341
  %1379 = vmatprep.subr.bf16.mxu0 0
  %1380 = vmatpush1.bf16.msra.mxu0 %v1342
  %1381 = vmatprep.subr.bf16.mxu0 0
  %1382 = vmatpush1.bf16.msra.mxu0 %v1343
  %1383 = vmatprep.subr.bf16.mxu0 0
  %1384 = vmatpush1.bf16.msra.mxu0 %v1344
  %1385 = vmatprep.subr.bf16.mxu0 0
  %1386 = vmatpush1.bf16.msra.mxu0 %v1345
  %1387 = vmatprep.subr.bf16.mxu0 0
  %1388 = vmatpush1.bf16.msra.mxu0 %v1346
  %1389 = vmatprep.subr.bf16.mxu0 0
  %1390 = vmatpush1.bf16.msra.mxu0 %v1347
  %1391 = vmatprep.subr.bf16.mxu0 0
  %1392 = vmatpush1.bf16.msra.mxu0 %v1348
  %1393 = vmatprep.subr.bf16.mxu0 0
  %1394 = vmatpush1.bf16.msra.mxu0 %v1349
  %1395 = vmatprep.subr.bf16.mxu0 0
  %1396 = vmatpush1.bf16.msra.mxu0 %v1350
  %1397 = vmatprep.subr.bf16.mxu0 0
  %1398 = vmatpush1.bf16.msra.mxu0 %v1351
  %1399 = vmatprep.subr.bf16.mxu0 0
  %1400 = vmatpush1.bf16.msra.mxu0 %v1352
  %1401 = vmatprep.mubr.bf16.mxu0 %v1314
  %1402 = vmatmul.mubr.bf16.gmra.mrb[0].mxu0 %v1313
  %v1403 = vpop.f32.mrb[0].mxu0
  %v1404 = vadd.f32 0.0, %v1403
  %v1405 = vpop.f32.mrb[0].mxu0
  %v1406 = vpop.f32.mrb[0].mxu0
  %v1407 = vadd.f32 0.0, %v1406
  %v1408 = vpop.f32.mrb[0].mxu0
  %1409 = vmatprep.mubr.bf16.mxu0 %v1318
  %1410 = vmatmul.mubr.bf16.gmra.mrb[0].mxu0 %v1317
  %v1411 = vpop.f32.mrb[0].mxu0
  %v1412 = vadd.f32 0.0, %v1411
  %v1413 = vpop.f32.mrb[0].mxu0
  %v1414 = vpop.f32.mrb[0].mxu0
  %v1415 = vadd.f32 0.0, %v1414
  %v1416 = vpop.f32.mrb[0].mxu0
  %1417 = vmatprep.mubr.bf16.mxu0 %v1322
  %1418 = vmatmul.mubr.bf16.gmra.mrb[0].mxu0 %v1321
  %v1419 = vpop.f32.mrb[0].mxu0
  %v1420 = vadd.f32 0.0, %v1419
  %v1421 = vpop.f32.mrb[0].mxu0
  %v1422 = vpop.f32.mrb[0].mxu0
  %v1423 = vadd.f32 0.0, %v1422
  %v1424 = vpop.f32.mrb[0].mxu0
  %1425 = vmatprep.mubr.bf16.mxu0 %v1326
  %1426 = vmatmul.mubr.bf16.gmra.mrb[0].mxu0 %v1325
  %v1427 = vpop.f32.mrb[0].mxu0
  %v1428 = vadd.f32 0.0, %v1427
  %v1429 = vpop.f32.mrb[0].mxu0
  %v1430 = vpop.f32.mrb[0].mxu0
  %v1431 = vadd.f32 0.0, %v1430
  %v1432 = vpop.f32.mrb[0].mxu0
  %1433 = vdwg.mxu0
  %1434 = vmatprep.subr.bf16.mxu0 0
  %1435 = vmatpush1.bf16.msra.mxu0 %v1353
  %1436 = vmatprep.subr.bf16.mxu0 0
  %1437 = vmatpush1.bf16.msra.mxu0 %v1354
  %1438 = vmatprep.subr.bf16.mxu0 0
  %1439 = vmatpush1.bf16.msra.mxu0 %v1355
  %1440 = vmatprep.subr.bf16.mxu0 0
  %1441 = vmatpush1.bf16.msra.mxu0 %v1356
  %1442 = vmatprep.subr.bf16.mxu0 0
  %1443 = vmatpush1.bf16.msra.mxu0 %v1357
  %1444 = vmatprep.subr.bf16.mxu0 0
  %1445 = vmatpush1.bf16.msra.mxu0 %v1358
  %1446 = vmatprep.subr.bf16.mxu0 0
  %1447 = vmatpush1.bf16.msra.mxu0 %v1359
  %1448 = vmatprep.subr.bf16.mxu0 0
  %1449 = vmatpush1.bf16.msra.mxu0 %v1360
  %1450 = vmatprep.subr.bf16.mxu0 0
  %1451 = vmatpush1.bf16.msra.mxu0 %v1361
  %1452 = vmatprep.subr.bf16.mxu0 0
  %1453 = vmatpush1.bf16.msra.mxu0 %v1362
  %1454 = vmatprep.subr.bf16.mxu0 0
  %1455 = vmatpush1.bf16.msra.mxu0 %v1363
  %1456 = vmatprep.subr.bf16.mxu0 0
  %1457 = vmatpush1.bf16.msra.mxu0 %v1364
  %1458 = vmatprep.subr.bf16.mxu0 0
  %1459 = vmatpush1.bf16.msra.mxu0 %v1365
  %1460 = vmatprep.subr.bf16.mxu0 0
  %1461 = vmatpush1.bf16.msra.mxu0 %v1366
  %1462 = vmatprep.subr.bf16.mxu0 0
  %1463 = vmatpush1.bf16.msra.mxu0 %v1367
  %1464 = vmatprep.subr.bf16.mxu0 0
  %1465 = vmatpush1.bf16.msra.mxu0 %v1368
  %1466 = vmatprep.mubr.bf16.mxu0 %v1316
  %1467 = vmatmul.mubr.bf16.gmra.mrb[0].mxu0 %v1315
  %v1468 = vpop.f32.mrb[0].mxu0
  %v1469 = vadd.f32 %v1404, %v1468
  %v1470 = vpop.f32.mrb[0].mxu0
  %v1471 = vpop.f32.mrb[0].mxu0
  %v1472 = vadd.f32 %v1407, %v1471
  %v1473 = vpop.f32.mrb[0].mxu0
  %1474 = vmatprep.mubr.bf16.mxu0 %v1320
  %1475 = vmatmul.mubr.bf16.gmra.mrb[0].mxu0 %v1319
  %v1476 = vpop.f32.mrb[0].mxu0
  %v1477 = vadd.f32 %v1412, %v1476
  %v1478 = vpop.f32.mrb[0].mxu0
  %v1479 = vpop.f32.mrb[0].mxu0
  %v1480 = vadd.f32 %v1415, %v1479
  %v1481 = vpop.f32.mrb[0].mxu0
  %1482 = vmatprep.mubr.bf16.mxu0 %v1324
  %1483 = vmatmul.mubr.bf16.gmra.mrb[0].mxu0 %v1323
  %v1484 = vpop.f32.mrb[0].mxu0
  %v1485 = vadd.f32 %v1420, %v1484
  %v1486 = vpop.f32.mrb[0].mxu0
  %v1487 = vpop.f32.mrb[0].mxu0
  %v1488 = vadd.f32 %v1423, %v1487
  %v1489 = vpop.f32.mrb[0].mxu0
  %1490 = vmatprep.mubr.bf16.mxu0 %v1328
  %1491 = vmatmul.mubr.bf16.gmra.mrb[0].mxu0 %v1327
  %v1492 = vpop.f32.mrb[0].mxu0
  %v1493 = vadd.f32 %v1428, %v1492
  %v1494 = vpop.f32.mrb[0].mxu0
  %v1495 = vpop.f32.mrb[0].mxu0
  %v1496 = vadd.f32 %v1431, %v1495
  %v1497 = vpop.f32.mrb[0].mxu0
  %1498 = vdwg.mxu0
  %v1499 = vadd.f32 %v1329, %v1469
  %v1500 = vadd.f32 %v1330, %v1472
  %v1501 = vadd.f32 %v1331, %v1477
  %v1502 = vadd.f32 %v1332, %v1480
  %v1503 = vadd.f32 %v1333, %v1485
  %v1504 = vadd.f32 %v1334, %v1488
  %v1505 = vadd.f32 %v1335, %v1493
  %v1506 = vadd.f32 %v1336, %v1496
  %1507 = vst [vmem:[%s6] sm:$0xff] %v1499
  %1508 = vst [vmem:[%s6 + $0x8] sm:$0xff] %v1500
  %1509 = vst [vmem:[%s6 + $0x10] sm:$0xff] %v1501
  %1510 = vst [vmem:[%s6 + $0x18] sm:$0xff] %v1502
  %1511 = vst [vmem:[%s6 + $0x20] sm:$0xff] %v1503
  %1512 = vst [vmem:[%s6 + $0x28] sm:$0xff] %v1504
  %1513 = vst [vmem:[%s6 + $0x30] sm:$0xff] %v1505
  %1514 = vst [vmem:[%s6 + $0x38] sm:$0xff] %v1506
  // Predicated region
  $region30: #{triconv_forward.1} parent=0 // pred_check
    _
  $region31: #{triconv_forward.1} parent=0 // pred_check_branch
    %1516 = sbr.rel (0) target = $region33
  $region32: #{triconv_forward.1} parent=0 // pred_region
    _
  $region33: #{triconv_forward.1} parent=0 // pred_fallthru
    _
  // Predicated region
  $region34: #{triconv_forward.1} parent=0 // pred_check
    _
  $region35: #{triconv_forward.1} parent=0 // pred_check_branch
    %1518 = sbr.rel (0) target = $region37
  $region36: #{triconv_forward.1} parent=0 // pred_region
    _
  $region37: #{triconv_forward.1} parent=0 // pred_fallthru
    _

</llo_original>
